<compile_context>
chip_gen: v6e
topology: v6e:2x2x1
jax: 0.10.0
libtpu: 0.0.40
codegen_flags: <defaults>
</compile_context>

<pallas_src>
import functools

import jax
import jax.numpy as jnp
from jax import lax
from jax.experimental import pallas as pl
from jax.experimental.pallas import tpu as pltpu


def _vmem_budget_bytes():
    """Per-core VMEM budget: physical capacity minus ~16 MiB headroom, capped
    at 110 MiB (so v5e/v6e use most of their 128 MiB, v7x stays under 64 MiB)."""
    try:
        cap = int(pltpu.get_tpu_info().vmem_capacity_bytes)
    except Exception:
        cap = 64 << 20  # conservative (v7x per-TC) fallback
    return int(min(cap - (16 << 20), 110 << 20))


def _precompute(d_beta, d_gamma, H1, H2, lam0, lam1, alpha):
    """Build bf16 Hcat (4F, F) with lam0/lam1 and lam1*L_gamma folded in, and
    f32 alpha * Q_tild^{-1} (N, 1)."""
    F = H1.shape[0]
    H1 = H1.astype(jnp.float32)
    H2 = H2.astype(jnp.float32)
    eyeF = jnp.eye(F, dtype=jnp.float32)
    H1s, H1p = H1 + H1.T, H1 @ H1.T
    H2s, H2p = H2 + H2.T, H2 @ H2.T
    # Slab layout is [AbY | DbY | AgY | DgY]; lam1*L_gamma@Y = DgY - AgY is
    # absorbed into the AgY / DgY blocks via -/+ lam1*I.
    Hcat = jnp.concatenate(
        [lam0 * H1s, -lam0 * H1p, lam1 * (H2s - eyeF), lam1 * (eyeF - H2p)],
        axis=0).astype(jnp.bfloat16)                         # (4F, F) bf16
    aq = (alpha / (lam0 * d_beta + lam1 * d_gamma + 1.0)).astype(jnp.float32)
    return Hcat, aq


# ----------------------------------------------------------------------------
# Path 1: whole graph resident in VMEM (small / medium N).
# ----------------------------------------------------------------------------
def _gcn_resident_kernel(acat_ref, x_ref, db_ref, dg_ref, hcat_ref, aq_ref,
                         y_ref, slab_ref, *, alpha, num_steps):
    N, F = x_ref.shape
    Y0 = x_ref[...]                      # (N, F)  f32
    Acat = acat_ref[...]                 # (2N, N) bf16: [A_beta; A_gamma]
    Hcat = hcat_ref[...]                 # (4F, F) bf16 (lam / L_gamma folded)
    # Hoist (N,1)->(N,F) lane broadcasts out of the unrolled step loop.
    db_b = jnp.broadcast_to(db_ref[...], (N, F))
    dg_b = jnp.broadcast_to(dg_ref[...], (N, F))
    aq_b = jnp.broadcast_to(aq_ref[...], (N, F))
    one_m_alpha = 1.0 - alpha

    def step(_, Y):
        # Single stacked MXU dot: [A_beta@Y ; A_gamma@Y], bf16 in / f32 acc.
        AY = jnp.dot(Acat, Y.astype(jnp.bfloat16),
                     preferred_element_type=jnp.float32)      # (2N, F) f32
        DbY = db_b * Y                                        # diag(D_beta)  @ Y
        DgY = dg_b * Y                                        # diag(D_gamma) @ Y
        # bf16 slab in VMEM scratch, then one fused K=4F bf16 MXU dot.
        slab_ref[:, 0:F] = AY[:N].astype(jnp.bfloat16)
        slab_ref[:, F:2 * F] = DbY.astype(jnp.bfloat16)
        slab_ref[:, 2 * F:3 * F] = AY[N:].astype(jnp.bfloat16)
        slab_ref[:, 3 * F:4 * F] = DgY.astype(jnp.bfloat16)
        hterm = jnp.dot(slab_ref[...], Hcat,
                        preferred_element_type=jnp.float32)   # (N, F) f32
        return one_m_alpha * Y + aq_b * (hterm + Y0)

    # Cap unrolling: full unroll of many steps inflates code size / live ranges.
    y_ref[...] = lax.fori_loop(0, num_steps, step, Y0,
                               unroll=bool(num_steps <= 4))


def graph_convolution(X, A_beta, A_gamma, d_beta, d_gamma, H1, H2,
                      *, lam0, lam1, alpha, num_steps):
    N, F = X.shape
    # N%16 keeps the bf16 A_cat rows sublane-pair aligned.
    assert N % 16 == 0 and F % 128 == 0, "resident path needs N%16==0, F%128==0"
    Hcat, aq = _precompute(d_beta, d_gamma, H1, H2, lam0, lam1, alpha)
    A_cat = jnp.concatenate([A_beta, A_gamma], axis=0).astype(jnp.bfloat16)

    kernel = functools.partial(_gcn_resident_kernel, alpha=float(alpha),
                               num_steps=int(num_steps))
    vmem = pl.BlockSpec(memory_space=pltpu.MemorySpace.VMEM)
    return pl.pallas_call(
        kernel,
        out_shape=jax.ShapeDtypeStruct((N, F), jnp.float32),
        in_specs=[vmem] * 6,
        out_specs=vmem,
        scratch_shapes=[pltpu.VMEM((N, 4 * F), jnp.bfloat16)],
        compiler_params=pltpu.CompilerParams(
            vmem_limit_bytes=_vmem_budget_bytes()),
    )(A_cat, X.astype(jnp.float32),
      d_beta.astype(jnp.float32), d_gamma.astype(jnp.float32), Hcat, aq)


# ----------------------------------------------------------------------------
# Path 2: row-tiled per-step kernel (large N / v7x megacore).
# Grid over TM-row blocks of the stacked adjacency; the full current Y (bf16)
# and Hcat stay resident in VMEM; the step loop stays outside (each step needs
# the fully updated Y).
# ----------------------------------------------------------------------------
def _a_tile_spec(tm, N):
    """A-stack row-tile spec; triple-buffer the streaming A DMA if supported."""
    idx = lambda i: (0, i, 0)
    if hasattr(pl, "Buffered"):
        try:
            return pl.BlockSpec((2, tm, N), idx, pipeline_mode=pl.Buffered(3))
        except TypeError:
            pass
    return pl.BlockSpec((2, tm, N), idx)


def _gcn_step_tiled_kernel(astk_ref, ybf_ref, yt_ref, y0_ref, db_ref, dg_ref,
                           hcat_ref, aq_ref, out_ref, slab_ref, *, alpha):
    TM, F = out_ref.shape
    N = ybf_ref.shape[0]
    A = astk_ref[...].reshape(2 * TM, N)             # bf16 [Ab_tile; Ag_tile]
    # Full Y is pre-cast to bf16 once per step (in the wrapper), not per tile.
    AY = jnp.dot(A, ybf_ref[...],
                 preferred_element_type=jnp.float32)          # (2TM, F) f32
    Yt = yt_ref[...]                                  # (TM, F) f32 current rows
    DbY = db_ref[...] * Yt
    DgY = dg_ref[...] * Yt
    slab_ref[:, 0:F] = AY[:TM].astype(jnp.bfloat16)
    slab_ref[:, F:2 * F] = DbY.astype(jnp.bfloat16)
    slab_ref[:, 2 * F:3 * F] = AY[TM:].astype(jnp.bfloat16)
    slab_ref[:, 3 * F:4 * F] = DgY.astype(jnp.bfloat16)
    hterm = jnp.dot(slab_ref[...], hcat_ref[...],
                    preferred_element_type=jnp.float32)       # (TM, F) f32
    out_ref[...] = (1.0 - alpha) * Yt + aq_ref[...] * (hterm + y0_ref[...])


def graph_convolution_tiled(X, A_beta, A_gamma, d_beta, d_gamma, H1, H2,
                            *, lam0, lam1, alpha, num_steps, tm=128):
    # TODO(synk): bump tm to 256 on v6e/v7x large-N runs (better MXU fill),
    # re-checking the per-TC VMEM sum on v7x (64 MiB/TC).
    N, F = X.shape
    assert N % tm == 0 and tm % 16 == 0 and F % 128 == 0, \
        "tiled path needs N%tm==0, tm%16==0, F%128==0"
    Hcat, aq = _precompute(d_beta, d_gamma, H1, H2, lam0, lam1, alpha)
    A_stack = jnp.stack([A_beta, A_gamma], axis=0).astype(jnp.bfloat16)  # (2,N,N)
    db = d_beta.astype(jnp.float32)
    dg = d_gamma.astype(jnp.float32)
    num_tiles = N // tm

    kernel = functools.partial(_gcn_step_tiled_kernel, alpha=float(alpha))
    step_call = pl.pallas_call(
        kernel,
        out_shape=jax.ShapeDtypeStruct((N, F), jnp.float32),
        grid_spec=pltpu.PrefetchScalarGridSpec(
            num_scalar_prefetch=0,
            grid=(num_tiles,),
            in_specs=[
                _a_tile_spec(tm, N),                          # A_stack row tile
                pl.BlockSpec((N, F), lambda i: (0, 0)),       # full current Y (bf16)
                pl.BlockSpec((tm, F), lambda i: (i, 0)),      # current Y rows (f32)
                pl.BlockSpec((tm, F), lambda i: (i, 0)),      # Y0 row tile
                pl.BlockSpec((tm, 1), lambda i: (i, 0)),      # diag(D_beta) tile
                pl.BlockSpec((tm, 1), lambda i: (i, 0)),      # diag(D_gamma) tile
                pl.BlockSpec((4 * F, F), lambda i: (0, 0)),   # Hcat (resident, bf16)
                pl.BlockSpec((tm, 1), lambda i: (i, 0)),      # alpha*Q^-1 tile
            ],
            out_specs=pl.BlockSpec((tm, F), lambda i: (i, 0)),
            scratch_shapes=[pltpu.VMEM((tm, 4 * F), jnp.bfloat16)],
        ),
        compiler_params=pltpu.CompilerParams(
            dimension_semantics=("parallel",),
            vmem_limit_bytes=_vmem_budget_bytes()),
    )

    X = X.astype(jnp.float32)
    Y = X
    for _ in range(num_steps):
        Y = step_call(A_stack, Y.astype(jnp.bfloat16), Y, X, db, dg, Hcat, aq)
    return Y


# ----------------------------------------------------------------------------
# Dispatcher: keep A resident as long as the generation's VMEM allows
# (avoids re-streaming 2N^2 bf16 bytes of A per step), else stream row tiles.
# ----------------------------------------------------------------------------
def graph_convolution_auto(X, A_beta, A_gamma, d_beta, d_gamma, H1, H2,
                           *, lam0, lam1, alpha, num_steps, tm=128):
    N, F = X.shape
    budget = _vmem_budget_bytes()
    # Rough resident footprint: bf16 A_cat (4N^2 B) + f32 X / Y carry /
    # broadcasts / AY / hterm temporaries (~72 N F B) + bf16 slab + Hcat.
    resident_bytes = 4 * N * N + 72 * N * F + 8 * N * F + 8 * F * F
    fits = (N % 16 == 0) and (F % 128 == 0) and resident_bytes <= budget
    can_tile = (N % tm == 0) and (tm % 16 == 0) and (F % 128 == 0)
    # TODO(synk): on v7x (2 TensorCores) lower this crossover so medium-N
    # graphs take the 2-TC "parallel" tiled path instead of one resident core.
    if fits or not can_tile:
        return graph_convolution(X, A_beta, A_gamma, d_beta, d_gamma, H1, H2,
                                 lam0=lam0, lam1=lam1, alpha=alpha,
                                 num_steps=num_steps)
    return graph_convolution_tiled(X, A_beta, A_gamma, d_beta, d_gamma, H1, H2,
                                   lam0=lam0, lam1=lam1, alpha=alpha,
                                   num_steps=num_steps, tm=tm)


# ----------------------------------------------------------------------------
# Pure-JAX reference mirroring the PyTorch forward (H branch), f32 throughout.
# ----------------------------------------------------------------------------
def graph_convolution_ref(X, A_beta, A_gamma, d_beta, d_gamma, H1, H2,
                          *, lam0, lam1, alpha, num_steps):
    Y = Y0 = X
    q_inv = 1.0 / (lam0 * d_beta + lam1 * d_gamma + 1.0)
    H1s, H1p = H1 + H1.T, H1 @ H1.T
    H2s, H2p = H2 + H2.T, H2 @ H2.T
    for _ in range(num_steps):
        AbY, AgY = A_beta @ Y, A_gamma @ Y
        DbY, DgY = d_beta * Y, d_gamma * Y
        LgY = DgY - AgY
        Y_hat = (lam0 * (AbY @ H1s - DbY @ H1p)
                 + Y0
                 + lam1 * (LgY + AgY @ H2s - DgY @ H2p))
        Y = (1.0 - alpha) * Y + alpha * (q_inv * Y_hat)
    return Y


if __name__ == "__main__":
    lam0, lam1, lam4 = 1.0, 1.0, 0.0
    alp = 0.0                 # args.alp == 0 -> alpha = 1/(1+lam4+lam0+lam1)
    alpha = alp if alp != 0 else 1.0 / (1.0 + lam4 + lam0 + lam1)
    num_steps = 3             # args.prop_step

    def make_problem(key, N, F):
        kx, kab, kag, kh1, kh2 = jax.random.split(key, 5)
        X = jax.random.normal(kx, (N, F), dtype=jnp.float32)
        Ab_raw = jax.random.uniform(kab, (N, N), dtype=jnp.float32)
        A_beta = (Ab_raw + Ab_raw.T) * 0.5 / N
        Ag_raw = jax.random.uniform(kag, (N, N), dtype=jnp.float32)
        A_gamma = (Ag_raw + Ag_raw.T) * 0.5 / N
        d_beta = jnp.sum(A_beta, axis=1, keepdims=True)
        d_gamma = jnp.sum(A_gamma, axis=1, keepdims=True)
        bound = 1.0 / F
        eye = jnp.eye(F, dtype=jnp.float32)
        H1 = jax.random.normal(kh1, (F, F), dtype=jnp.float32) * bound + eye
        H2 = jax.random.normal(kh2, (F, F), dtype=jnp.float32) * bound + eye
        return X, A_beta, A_gamma, d_beta, d_gamma, H1, H2

    key = jax.random.PRNGKey(0)
    k1, k2 = jax.random.split(key)

    # 1) Auto dispatch -> whole-graph VMEM-resident path (small N).
    args1 = make_problem(k1, 64, 128)
    out1 = graph_convolution_auto(*args1, lam0=lam0, lam1=lam1, alpha=alpha,
                                  num_steps=num_steps)
    out1 = jax.block_until_ready(out1)
    ref1 = graph_convolution_ref(*args1, lam0=lam0, lam1=lam1, alpha=alpha,
                                 num_steps=num_steps)
    assert out1.shape == (64, 128)
    # Both matmuls are bf16-in/f32-acc -> relaxed tolerance vs f32 reference.
    assert jnp.allclose(out1, ref1, atol=2e-2, rtol=2e-2), \
        float(jnp.max(jnp.abs(out1 - ref1)))

    # 2) Row-tiled per-step path (grid over row blocks; large-N / v7x path).
    args2 = make_problem(k2, 256, 128)
    out2 = graph_convolution_tiled(*args2, lam0=lam0, lam1=lam1, alpha=alpha,
                                   num_steps=num_steps, tm=128)
    out2 = jax.block_until_ready(out2)
    ref2 = graph_convolution_ref(*args2, lam0=lam0, lam1=lam1, alpha=alpha,
                                 num_steps=num_steps)
    assert out2.shape == (256, 128)
    assert jnp.allclose(out2, ref2, atol=2e-2, rtol=2e-2), \
        float(jnp.max(jnp.abs(out2 - ref2)))

    print("KERNEL_OK")
</pallas_src>

<mosaic_0001>
module attributes {stable_mosaic.version = 11 : i64} {
  func.func @_gcn_resident_kernel(%arg0: memref<128x64xbf16, #tpu.memory_space<vmem>>, %arg1: memref<64x128xf32, #tpu.memory_space<vmem>>, %arg2: memref<64x1xf32, #tpu.memory_space<vmem>>, %arg3: memref<64x1xf32, #tpu.memory_space<vmem>>, %arg4: memref<512x128xbf16, #tpu.memory_space<vmem>>, %arg5: memref<64x1xf32, #tpu.memory_space<vmem>>, %arg6: memref<64x128xf32, #tpu.memory_space<vmem>>, %arg7: memref<64x512xbf16, #tpu.memory_space<vmem>>) attributes {dimension_semantics = [], scalar_prefetch = 0 : i64, scratch_operands = 1 : i64, tpu.core_type = #tpu.core_type<tc>} {
    %c0 = arith.constant 0 : index
    %c0_0 = arith.constant 0 : index
    %0 = vector.load %arg1[%c0, %c0_0] : memref<64x128xf32, #tpu.memory_space<vmem>>, vector<64x128xf32>
    %c0_1 = arith.constant 0 : index
    %c0_2 = arith.constant 0 : index
    %1 = vector.load %arg0[%c0_1, %c0_2] : memref<128x64xbf16, #tpu.memory_space<vmem>>, vector<128x64xbf16>
    %c0_3 = arith.constant 0 : index
    %c0_4 = arith.constant 0 : index
    %2 = vector.load %arg4[%c0_3, %c0_4] : memref<512x128xbf16, #tpu.memory_space<vmem>>, vector<512x128xbf16>
    %c0_5 = arith.constant 0 : index
    %c0_6 = arith.constant 0 : index
    %3 = vector.load %arg2[%c0_5, %c0_6] : memref<64x1xf32, #tpu.memory_space<vmem>>, vector<64x1xf32>
    %4 = vector.shape_cast %3 : vector<64x1xf32> to vector<64x1xf32>
    %5 = vector.broadcast %4 : vector<64x1xf32> to vector<64x128xf32>
    %c0_7 = arith.constant 0 : index
    %c0_8 = arith.constant 0 : index
    %6 = vector.load %arg3[%c0_7, %c0_8] : memref<64x1xf32, #tpu.memory_space<vmem>>, vector<64x1xf32>
    %7 = vector.shape_cast %6 : vector<64x1xf32> to vector<64x1xf32>
    %8 = vector.broadcast %7 : vector<64x1xf32> to vector<64x128xf32>
    %c0_9 = arith.constant 0 : index
    %c0_10 = arith.constant 0 : index
    %9 = vector.load %arg5[%c0_9, %c0_10] : memref<64x1xf32, #tpu.memory_space<vmem>>, vector<64x1xf32>
    %10 = vector.shape_cast %9 : vector<64x1xf32> to vector<64x1xf32>
    %11 = vector.broadcast %10 : vector<64x1xf32> to vector<64x128xf32>
    %c0_i32 = arith.constant 0 : i32
    %12 = arith.truncf %0 : vector<64x128xf32> to vector<64x128xbf16>
    %cst = arith.constant dense<0.000000e+00> : vector<128x128xf32>
    %13 = tpu.matmul %1, %12, %cst {dimension_numbers = #tpu.dot_dimension_numbers<[1], [0], [0], [1], [0, 0, 1, 1], [], []>} : vector<128x64xbf16>, vector<64x128xbf16>, vector<128x128xf32> -> vector<128x128xf32>
    %14 = arith.mulf %5, %0 : vector<64x128xf32>
    %15 = arith.mulf %8, %0 : vector<64x128xf32>
    %16 = vector.extract_strided_slice %13 {offsets = [0, 0], sizes = [64, 128], strides = [1, 1]} : vector<128x128xf32> to vector<64x128xf32>
    %17 = arith.truncf %16 : vector<64x128xf32> to vector<64x128xbf16>
    %c0_11 = arith.constant 0 : index
    %c0_12 = arith.constant 0 : index
    %18 = vector.load %arg7[%c0_11, %c0_12] : memref<64x512xbf16, #tpu.memory_space<vmem>>, vector<64x128xbf16>
    tpu.vector_store %arg7[%c0_11, %c0_12], %17 {strides = array<i32>} : memref<64x512xbf16, #tpu.memory_space<vmem>>, vector<64x128xbf16>,
    %19 = arith.truncf %14 : vector<64x128xf32> to vector<64x128xbf16>
    %c0_13 = arith.constant 0 : index
    %c128 = arith.constant 128 : index
    %20 = vector.load %arg7[%c0_13, %c128] : memref<64x512xbf16, #tpu.memory_space<vmem>>, vector<64x128xbf16>
    tpu.vector_store %arg7[%c0_13, %c128], %19 {strides = array<i32>} : memref<64x512xbf16, #tpu.memory_space<vmem>>, vector<64x128xbf16>,
    %21 = vector.extract_strided_slice %13 {offsets = [64, 0], sizes = [64, 128], strides = [1, 1]} : vector<128x128xf32> to vector<64x128xf32>
    %22 = arith.truncf %21 : vector<64x128xf32> to vector<64x128xbf16>
    %c0_14 = arith.constant 0 : index
    %c256 = arith.constant 256 : index
    %23 = vector.load %arg7[%c0_14, %c256] : memref<64x512xbf16, #tpu.memory_space<vmem>>, vector<64x128xbf16>
    tpu.vector_store %arg7[%c0_14, %c256], %22 {strides = array<i32>} : memref<64x512xbf16, #tpu.memory_space<vmem>>, vector<64x128xbf16>,
    %24 = arith.truncf %15 : vector<64x128xf32> to vector<64x128xbf16>
    %c0_15 = arith.constant 0 : index
    %c384 = arith.constant 384 : index
    %25 = vector.load %arg7[%c0_15, %c384] : memref<64x512xbf16, #tpu.memory_space<vmem>>, vector<64x128xbf16>
    tpu.vector_store %arg7[%c0_15, %c384], %24 {strides = array<i32>} : memref<64x512xbf16, #tpu.memory_space<vmem>>, vector<64x128xbf16>,
    %c0_16 = arith.constant 0 : index
    %c0_17 = arith.constant 0 : index
    %26 = vector.load %arg7[%c0_16, %c0_17] : memref<64x512xbf16, #tpu.memory_space<vmem>>, vector<64x512xbf16>
    %cst_18 = arith.constant dense<0.000000e+00> : vector<64x128xf32>
    %27 = tpu.matmul %26, %2, %cst_18 {dimension_numbers = #tpu.dot_dimension_numbers<[1], [0], [0], [1], [0, 0, 1, 1], [], []>} : vector<64x512xbf16>, vector<512x128xbf16>, vector<64x128xf32> -> vector<64x128xf32>
    %cst_19 = arith.constant 0.666666686 : f32
    %28 = vector.broadcast %cst_19 : f32 to vector<64x128xf32>
    %29 = arith.mulf %28, %0 : vector<64x128xf32>
    %30 = arith.addf %27, %0 : vector<64x128xf32>
    %31 = arith.mulf %11, %30 : vector<64x128xf32>
    %32 = arith.addf %29, %31 : vector<64x128xf32>
    %c1_i32 = arith.constant 1 : i32
    %33 = arith.truncf %32 : vector<64x128xf32> to vector<64x128xbf16>
    %cst_20 = arith.constant dense<0.000000e+00> : vector<128x128xf32>
    %34 = tpu.matmul %1, %33, %cst_20 {dimension_numbers = #tpu.dot_dimension_numbers<[1], [0], [0], [1], [0, 0, 1, 1], [], []>} : vector<128x64xbf16>, vector<64x128xbf16>, vector<128x128xf32> -> vector<128x128xf32>
    %35 = arith.mulf %5, %32 : vector<64x128xf32>
    %36 = arith.mulf %8, %32 : vector<64x128xf32>
    %37 = vector.extract_strided_slice %34 {offsets = [0, 0], sizes = [64, 128], strides = [1, 1]} : vector<128x128xf32> to vector<64x128xf32>
    %38 = arith.truncf %37 : vector<64x128xf32> to vector<64x128xbf16>
    %c0_21 = arith.constant 0 : index
    %c0_22 = arith.constant 0 : index
    %39 = vector.load %arg7[%c0_21, %c0_22] : memref<64x512xbf16, #tpu.memory_space<vmem>>, vector<64x128xbf16>
    tpu.vector_store %arg7[%c0_21, %c0_22], %38 {strides = array<i32>} : memref<64x512xbf16, #tpu.memory_space<vmem>>, vector<64x128xbf16>,
    %40 = arith.truncf %35 : vector<64x128xf32> to vector<64x128xbf16>
    %c0_23 = arith.constant 0 : index
    %c128_24 = arith.constant 128 : index
    %41 = vector.load %arg7[%c0_23, %c128_24] : memref<64x512xbf16, #tpu.memory_space<vmem>>, vector<64x128xbf16>
    tpu.vector_store %arg7[%c0_23, %c128_24], %40 {strides = array<i32>} : memref<64x512xbf16, #tpu.memory_space<vmem>>, vector<64x128xbf16>,
    %42 = vector.extract_strided_slice %34 {offsets = [64, 0], sizes = [64, 128], strides = [1, 1]} : vector<128x128xf32> to vector<64x128xf32>
    %43 = arith.truncf %42 : vector<64x128xf32> to vector<64x128xbf16>
    %c0_25 = arith.constant 0 : index
    %c256_26 = arith.constant 256 : index
    %44 = vector.load %arg7[%c0_25, %c256_26] : memref<64x512xbf16, #tpu.memory_space<vmem>>, vector<64x128xbf16>
    tpu.vector_store %arg7[%c0_25, %c256_26], %43 {strides = array<i32>} : memref<64x512xbf16, #tpu.memory_space<vmem>>, vector<64x128xbf16>,
    %45 = arith.truncf %36 : vector<64x128xf32> to vector<64x128xbf16>
    %c0_27 = arith.constant 0 : index
    %c384_28 = arith.constant 384 : index
    %46 = vector.load %arg7[%c0_27, %c384_28] : memref<64x512xbf16, #tpu.memory_space<vmem>>, vector<64x128xbf16>
    tpu.vector_store %arg7[%c0_27, %c384_28], %45 {strides = array<i32>} : memref<64x512xbf16, #tpu.memory_space<vmem>>, vector<64x128xbf16>,
    %c0_29 = arith.constant 0 : index
    %c0_30 = arith.constant 0 : index
    %47 = vector.load %arg7[%c0_29, %c0_30] : memref<64x512xbf16, #tpu.memory_space<vmem>>, vector<64x512xbf16>
    %cst_31 = arith.constant dense<0.000000e+00> : vector<64x128xf32>
    %48 = tpu.matmul %47, %2, %cst_31 {dimension_numbers = #tpu.dot_dimension_numbers<[1], [0], [0], [1], [0, 0, 1, 1], [], []>} : vector<64x512xbf16>, vector<512x128xbf16>, vector<64x128xf32> -> vector<64x128xf32>
    %cst_32 = arith.constant 0.666666686 : f32
    %49 = vector.broadcast %cst_32 : f32 to vector<64x128xf32>
    %50 = arith.mulf %49, %32 : vector<64x128xf32>
    %51 = arith.addf %48, %0 : vector<64x128xf32>
    %52 = arith.mulf %11, %51 : vector<64x128xf32>
    %53 = arith.addf %50, %52 : vector<64x128xf32>
    %c2_i32 = arith.constant 2 : i32
    %54 = arith.truncf %53 : vector<64x128xf32> to vector<64x128xbf16>
    %cst_33 = arith.constant dense<0.000000e+00> : vector<128x128xf32>
    %55 = tpu.matmul %1, %54, %cst_33 {dimension_numbers = #tpu.dot_dimension_numbers<[1], [0], [0], [1], [0, 0, 1, 1], [], []>} : vector<128x64xbf16>, vector<64x128xbf16>, vector<128x128xf32> -> vector<128x128xf32>
    %56 = arith.mulf %5, %53 : vector<64x128xf32>
    %57 = arith.mulf %8, %53 : vector<64x128xf32>
    %58 = vector.extract_strided_slice %55 {offsets = [0, 0], sizes = [64, 128], strides = [1, 1]} : vector<128x128xf32> to vector<64x128xf32>
    %59 = arith.truncf %58 : vector<64x128xf32> to vector<64x128xbf16>
    %c0_34 = arith.constant 0 : index
    %c0_35 = arith.constant 0 : index
    %60 = vector.load %arg7[%c0_34, %c0_35] : memref<64x512xbf16, #tpu.memory_space<vmem>>, vector<64x128xbf16>
    tpu.vector_store %arg7[%c0_34, %c0_35], %59 {strides = array<i32>} : memref<64x512xbf16, #tpu.memory_space<vmem>>, vector<64x128xbf16>,
    %61 = arith.truncf %56 : vector<64x128xf32> to vector<64x128xbf16>
    %c0_36 = arith.constant 0 : index
    %c128_37 = arith.constant 128 : index
    %62 = vector.load %arg7[%c0_36, %c128_37] : memref<64x512xbf16, #tpu.memory_space<vmem>>, vector<64x128xbf16>
    tpu.vector_store %arg7[%c0_36, %c128_37], %61 {strides = array<i32>} : memref<64x512xbf16, #tpu.memory_space<vmem>>, vector<64x128xbf16>,
    %63 = vector.extract_strided_slice %55 {offsets = [64, 0], sizes = [64, 128], strides = [1, 1]} : vector<128x128xf32> to vector<64x128xf32>
    %64 = arith.truncf %63 : vector<64x128xf32> to vector<64x128xbf16>
    %c0_38 = arith.constant 0 : index
    %c256_39 = arith.constant 256 : index
    %65 = vector.load %arg7[%c0_38, %c256_39] : memref<64x512xbf16, #tpu.memory_space<vmem>>, vector<64x128xbf16>
    tpu.vector_store %arg7[%c0_38, %c256_39], %64 {strides = array<i32>} : memref<64x512xbf16, #tpu.memory_space<vmem>>, vector<64x128xbf16>,
    %66 = arith.truncf %57 : vector<64x128xf32> to vector<64x128xbf16>
    %c0_40 = arith.constant 0 : index
    %c384_41 = arith.constant 384 : index
    %67 = vector.load %arg7[%c0_40, %c384_41] : memref<64x512xbf16, #tpu.memory_space<vmem>>, vector<64x128xbf16>
    tpu.vector_store %arg7[%c0_40, %c384_41], %66 {strides = array<i32>} : memref<64x512xbf16, #tpu.memory_space<vmem>>, vector<64x128xbf16>,
    %c0_42 = arith.constant 0 : index
    %c0_43 = arith.constant 0 : index
    %68 = vector.load %arg7[%c0_42, %c0_43] : memref<64x512xbf16, #tpu.memory_space<vmem>>, vector<64x512xbf16>
    %cst_44 = arith.constant dense<0.000000e+00> : vector<64x128xf32>
    %69 = tpu.matmul %68, %2, %cst_44 {dimension_numbers = #tpu.dot_dimension_numbers<[1], [0], [0], [1], [0, 0, 1, 1], [], []>} : vector<64x512xbf16>, vector<512x128xbf16>, vector<64x128xf32> -> vector<64x128xf32>
    %cst_45 = arith.constant 0.666666686 : f32
    %70 = vector.broadcast %cst_45 : f32 to vector<64x128xf32>
    %71 = arith.mulf %70, %53 : vector<64x128xf32>
    %72 = arith.addf %69, %0 : vector<64x128xf32>
    %73 = arith.mulf %11, %72 : vector<64x128xf32>
    %74 = arith.addf %71, %73 : vector<64x128xf32>
    %c0_46 = arith.constant 0 : index
    %c0_47 = arith.constant 0 : index
    %75 = vector.load %arg6[%c0_46, %c0_47] : memref<64x128xf32, #tpu.memory_space<vmem>>, vector<64x128xf32>
    tpu.vector_store %arg6[%c0_46, %c0_47], %74 {strides = array<i32>} : memref<64x128xf32, #tpu.memory_space<vmem>>, vector<64x128xf32>,
    return
  }
}

</mosaic_0001>

<llo_original>
// kernel: tpu_custom_call.1
$region0: #{tpu_custom_call.1}
  #allocation0 [shape = 'u32[]', space=smem, size = 0x4, offset = 0x4, fixed_abs, tag = 'smem constant byte address 0x4 - core index']
  #allocation1 [shape = 'u32[144,128]{1,0:T(1,128)}', space=vmem, size = 0x12000, scoped, tag = 'internal scratch']
  #allocation2 [shape = 'bf16[64,512]{1,0:T(8,128)(2,1)}', space=vmem, size = 0x10000, scoped, tag = 'scratch operand']
  %s0 = inlined_call_operand.vmem [shape: bf16[128,64], index: 0, kind: input, shape index: {}]
  %s1 = inlined_call_operand.hbm [shape: f32[64,128], index: 1, kind: input, shape index: {}]
  %s2 = inlined_call_operand.vmem [shape: f32[64,1], index: 2, kind: input, shape index: {}]
  %s3 = inlined_call_operand.vmem [shape: f32[64,1], index: 3, kind: input, shape index: {}]
  %s4 = inlined_call_operand.vmem [shape: bf16[512,128], index: 4, kind: input, shape index: {}]
  %s5 = inlined_call_operand.vmem [shape: f32[64,1], index: 5, kind: input, shape index: {}]
  %s6 = inlined_call_operand.hbm [shape: f32[64,128], index: 6, kind: output, shape index: {}]
  %s7 = sld [smem:[#allocation0]]
  $region38: #{tpu_custom_call.1} parent=0
    _
  %s9 = ssub.s32 1, %s7
  %s10 = scalar_select 0, %s9, %s7
  $region1: #{tpu_custom_call.1} parent=0
    #allocation3 [shape = 'u8[32768]{0}', space=vmem, size = 0x8000, scoped, tag = 'input window, operand 1, single buffered']
    #allocation4 [shape = 's32[1]{0}', space=sflag, size = 0x4, scoped, tag = 'scoped memory for tpu_custom_call.1']
    #allocation5 [shape = 's32[1]{0}', space=sflag, size = 0x4, scoped, tag = 'scoped memory for tpu_custom_call.1']
    #allocation6 [shape = 'u8[32768]{0}', space=vmem, size = 0x8000, scoped, tag = 'output window, operand 0, single buffered']
    %11 = vsyncpa [#allocation4], 0
    %12 = vsyncpa [#allocation5], 0
    // Predicated region
    $region2: #{tpu_custom_call.1} parent=1 // pred_check
      _
    $region3: #{tpu_custom_call.1} parent=1 // pred_check_branch
      %14 = sbr.rel (0) target = $region5
    $region4: #{tpu_custom_call.1} parent=1 // pred_region
      _
    $region5: #{tpu_custom_call.1} parent=1 // pred_fallthru
      _
    // Predicated region
    $region6: #{tpu_custom_call.1} parent=1 // pred_check
      _
    $region7: #{tpu_custom_call.1} parent=1 // pred_check_branch
      %16 = sbr.rel (0) target = $region9
    $region8: #{tpu_custom_call.1} parent=1 // pred_region
      %s18 = ssub.s32 1024, 1024
      %19 = vsyncadd [#allocation4], %s18
      %s20 = sshll.u32 [#allocation3], 4
      %s21 = int_to_ptr.vmem [resolvable:$true] %s20
      %26 = dma.hbm_to_vmem [thread:$0]  %s1, 1024, %s21, [#allocation4], 128, 128, 8
    $region9: #{tpu_custom_call.1} parent=1 // pred_fallthru
      _
    // Predicated region
    $region10: #{tpu_custom_call.1} parent=1 // pred_check
      _
    $region11: #{tpu_custom_call.1} parent=1 // pred_check_branch
      %28 = sbr.rel (0) target = $region13
    $region12: #{tpu_custom_call.1} parent=1 // pred_region
      _
    $region13: #{tpu_custom_call.1} parent=1 // pred_fallthru
      _
    // Predicated region
    $region14: #{tpu_custom_call.1} parent=1 // pred_check
      _
    $region15: #{tpu_custom_call.1} parent=1 // pred_check_branch
      %30 = sbr.rel (0) target = $region17
    $region16: #{tpu_custom_call.1} parent=1 // pred_region
      _
    $region17: #{tpu_custom_call.1} parent=1 // pred_fallthru
      _
    // Predicated region
    $region18: #{tpu_custom_call.1} parent=1 // pred_check
      _
    $region19: #{tpu_custom_call.1} parent=1 // pred_check_branch
      %32 = sbr.rel (0) target = $region21
    $region20: #{tpu_custom_call.1} parent=1 // pred_region
      _
    $region21: #{tpu_custom_call.1} parent=1 // pred_fallthru
      _
    // Predicated region
    $region22: #{tpu_custom_call.1} parent=1 // pred_check
      _
    $region23: #{tpu_custom_call.1} parent=1 // pred_check_branch
      %34 = sbr.rel (0) target = $region25
    $region24: #{tpu_custom_call.1} parent=1 // pred_region
      _
    $region25: #{tpu_custom_call.1} parent=1 // pred_fallthru
      _
    // Predicated region
    $region26: #{tpu_custom_call.1} parent=1 // pred_check
      _
    $region27: #{tpu_custom_call.1} parent=1 // pred_check_branch
      %36 = sbr.rel (0) target = $region29
    $region28: #{tpu_custom_call.1} parent=1 // pred_region
      %37 = dma.done [#allocation4], 1024
    $region29: #{tpu_custom_call.1} parent=1 // pred_fallthru
      _
    %v39 = vld [vmem:[#allocation3] sm:$0xff]
    %v40 = vld [vmem:[#allocation3 + $0x8] sm:$0xff]
    %v41 = vld [vmem:[#allocation3 + $0x10] sm:$0xff]
    %v42 = vld [vmem:[#allocation3 + $0x18] sm:$0xff]
    %v43 = vld [vmem:[#allocation3 + $0x20] sm:$0xff]
    %v44 = vld [vmem:[#allocation3 + $0x28] sm:$0xff]
    %v45 = vld [vmem:[#allocation3 + $0x30] sm:$0xff]
    %v46 = vld [vmem:[#allocation3 + $0x38] sm:$0xff]
    %v47 = vld [vmem:[%s0] sm:$0xf]
    %v48 = vld [vmem:[%s0 + $0x4] sm:$0xf]
    %v49 = vld [vmem:[%s0 + $0x8] sm:$0xf]
    %v50 = vld [vmem:[%s0 + $0xc] sm:$0xf]
    %v51 = vld [vmem:[%s0 + $0x10] sm:$0xf]
    %v52 = vld [vmem:[%s0 + $0x14] sm:$0xf]
    %v53 = vld [vmem:[%s0 + $0x18] sm:$0xf]
    %v54 = vld [vmem:[%s0 + $0x1c] sm:$0xf]
    %v55 = vld [vmem:[%s0 + $0x20] sm:$0xf]
    %v56 = vld [vmem:[%s0 + $0x24] sm:$0xf]
    %v57 = vld [vmem:[%s0 + $0x28] sm:$0xf]
    %v58 = vld [vmem:[%s0 + $0x2c] sm:$0xf]
    %v59 = vld [vmem:[%s0 + $0x30] sm:$0xf]
    %v60 = vld [vmem:[%s0 + $0x34] sm:$0xf]
    %v61 = vld [vmem:[%s0 + $0x38] sm:$0xf]
    %v62 = vld [vmem:[%s0 + $0x3c] sm:$0xf]
    %v63 = vld [vmem:[%s4] sm:$0xf]
    %v64 = vld [vmem:[%s4 + $0x4] sm:$0xf]
    %v65 = vld [vmem:[%s4 + $0x8] sm:$0xf]
    %v66 = vld [vmem:[%s4 + $0xc] sm:$0xf]
    %v67 = vld [vmem:[%s4 + $0x10] sm:$0xf]
    %v68 = vld [vmem:[%s4 + $0x14] sm:$0xf]
    %v69 = vld [vmem:[%s4 + $0x18] sm:$0xf]
    %v70 = vld [vmem:[%s4 + $0x1c] sm:$0xf]
    %v71 = vld [vmem:[%s4 + $0x20] sm:$0xf]
    %v72 = vld [vmem:[%s4 + $0x24] sm:$0xf]
    %v73 = vld [vmem:[%s4 + $0x28] sm:$0xf]
    %v74 = vld [vmem:[%s4 + $0x2c] sm:$0xf]
    %v75 = vld [vmem:[%s4 + $0x30] sm:$0xf]
    %v76 = vld [vmem:[%s4 + $0x34] sm:$0xf]
    %v77 = vld [vmem:[%s4 + $0x38] sm:$0xf]
    %v78 = vld [vmem:[%s4 + $0x3c] sm:$0xf]
    %v79 = vld [vmem:[%s4 + $0x40] sm:$0xf]
    %v80 = vld [vmem:[%s4 + $0x44] sm:$0xf]
    %v81 = vld [vmem:[%s4 + $0x48] sm:$0xf]
    %v82 = vld [vmem:[%s4 + $0x4c] sm:$0xf]
    %v83 = vld [vmem:[%s4 + $0x50] sm:$0xf]
    %v84 = vld [vmem:[%s4 + $0x54] sm:$0xf]
    %v85 = vld [vmem:[%s4 + $0x58] sm:$0xf]
    %v86 = vld [vmem:[%s4 + $0x5c] sm:$0xf]
    %v87 = vld [vmem:[%s4 + $0x60] sm:$0xf]
    %v88 = vld [vmem:[%s4 + $0x64] sm:$0xf]
    %v89 = vld [vmem:[%s4 + $0x68] sm:$0xf]
    %v90 = vld [vmem:[%s4 + $0x6c] sm:$0xf]
    %v91 = vld [vmem:[%s4 + $0x70] sm:$0xf]
    %v92 = vld [vmem:[%s4 + $0x74] sm:$0xf]
    %v93 = vld [vmem:[%s4 + $0x78] sm:$0xf]
    %v94 = vld [vmem:[%s4 + $0x7c] sm:$0xf]
    %v95 = vld [vmem:[%s4 + $0x80] sm:$0xf]
    %v96 = vld [vmem:[%s4 + $0x84] sm:$0xf]
    %v97 = vld [vmem:[%s4 + $0x88] sm:$0xf]
    %v98 = vld [vmem:[%s4 + $0x8c] sm:$0xf]
    %v99 = vld [vmem:[%s4 + $0x90] sm:$0xf]
    %v100 = vld [vmem:[%s4 + $0x94] sm:$0xf]
    %v101 = vld [vmem:[%s4 + $0x98] sm:$0xf]
    %v102 = vld [vmem:[%s4 + $0x9c] sm:$0xf]
    %v103 = vld [vmem:[%s4 + $0xa0] sm:$0xf]
    %v104 = vld [vmem:[%s4 + $0xa4] sm:$0xf]
    %v105 = vld [vmem:[%s4 + $0xa8] sm:$0xf]
    %v106 = vld [vmem:[%s4 + $0xac] sm:$0xf]
    %v107 = vld [vmem:[%s4 + $0xb0] sm:$0xf]
    %v108 = vld [vmem:[%s4 + $0xb4] sm:$0xf]
    %v109 = vld [vmem:[%s4 + $0xb8] sm:$0xf]
    %v110 = vld [vmem:[%s4 + $0xbc] sm:$0xf]
    %v111 = vld [vmem:[%s4 + $0xc0] sm:$0xf]
    %v112 = vld [vmem:[%s4 + $0xc4] sm:$0xf]
    %v113 = vld [vmem:[%s4 + $0xc8] sm:$0xf]
    %v114 = vld [vmem:[%s4 + $0xcc] sm:$0xf]
    %v115 = vld [vmem:[%s4 + $0xd0] sm:$0xf]
    %v116 = vld [vmem:[%s4 + $0xd4] sm:$0xf]
    %v117 = vld [vmem:[%s4 + $0xd8] sm:$0xf]
    %v118 = vld [vmem:[%s4 + $0xdc] sm:$0xf]
    %v119 = vld [vmem:[%s4 + $0xe0] sm:$0xf]
    %v120 = vld [vmem:[%s4 + $0xe4] sm:$0xf]
    %v121 = vld [vmem:[%s4 + $0xe8] sm:$0xf]
    %v122 = vld [vmem:[%s4 + $0xec] sm:$0xf]
    %v123 = vld [vmem:[%s4 + $0xf0] sm:$0xf]
    %v124 = vld [vmem:[%s4 + $0xf4] sm:$0xf]
    %v125 = vld [vmem:[%s4 + $0xf8] sm:$0xf]
    %v126 = vld [vmem:[%s4 + $0xfc] sm:$0xf]
    %v127 = vld [vmem:[%s2] sm:$0xff]
    %v128 = vld [vmem:[%s2 + $0x8] sm:$0xff]
    %v129 = vld [vmem:[%s2 + $0x10] sm:$0xff]
    %v130 = vld [vmem:[%s2 + $0x18] sm:$0xff]
    %v131 = vld [vmem:[%s2 + $0x20] sm:$0xff]
    %v132 = vld [vmem:[%s2 + $0x28] sm:$0xff]
    %v133 = vld [vmem:[%s2 + $0x30] sm:$0xff]
    %v134 = vld [vmem:[%s2 + $0x38] sm:$0xff]
    %136 = vset.pattern.permute.xlu0 0
    %137 = vperm.xlu0 %136, %v127
    %v138 = vpop.permute.xlu0 %137
    %141 = vset.pattern.permute.xlu0 0
    %142 = vperm.xlu0 %141, %v128
    %v143 = vpop.permute.xlu0 %142
    %146 = vset.pattern.permute.xlu0 0
    %147 = vperm.xlu0 %146, %v129
    %v148 = vpop.permute.xlu0 %147
    %151 = vset.pattern.permute.xlu0 0
    %152 = vperm.xlu0 %151, %v130
    %v153 = vpop.permute.xlu0 %152
    %156 = vset.pattern.permute.xlu0 0
    %157 = vperm.xlu0 %156, %v131
    %v158 = vpop.permute.xlu0 %157
    %161 = vset.pattern.permute.xlu0 0
    %162 = vperm.xlu0 %161, %v132
    %v163 = vpop.permute.xlu0 %162
    %166 = vset.pattern.permute.xlu0 0
    %167 = vperm.xlu0 %166, %v133
    %v168 = vpop.permute.xlu0 %167
    %171 = vset.pattern.permute.xlu0 0
    %172 = vperm.xlu0 %171, %v134
    %v173 = vpop.permute.xlu0 %172
    %v175 = vld [vmem:[%s3] sm:$0xff]
    %v176 = vld [vmem:[%s3 + $0x8] sm:$0xff]
    %v177 = vld [vmem:[%s3 + $0x10] sm:$0xff]
    %v178 = vld [vmem:[%s3 + $0x18] sm:$0xff]
    %v179 = vld [vmem:[%s3 + $0x20] sm:$0xff]
    %v180 = vld [vmem:[%s3 + $0x28] sm:$0xff]
    %v181 = vld [vmem:[%s3 + $0x30] sm:$0xff]
    %v182 = vld [vmem:[%s3 + $0x38] sm:$0xff]
    %184 = vset.pattern.permute.xlu0 0
    %185 = vperm.xlu0 %184, %v175
    %v186 = vpop.permute.xlu0 %185
    %189 = vset.pattern.permute.xlu0 0
    %190 = vperm.xlu0 %189, %v176
    %v191 = vpop.permute.xlu0 %190
    %194 = vset.pattern.permute.xlu0 0
    %195 = vperm.xlu0 %194, %v177
    %v196 = vpop.permute.xlu0 %195
    %199 = vset.pattern.permute.xlu0 0
    %200 = vperm.xlu0 %199, %v178
    %v201 = vpop.permute.xlu0 %200
    %204 = vset.pattern.permute.xlu0 0
    %205 = vperm.xlu0 %204, %v179
    %v206 = vpop.permute.xlu0 %205
    %209 = vset.pattern.permute.xlu0 0
    %210 = vperm.xlu0 %209, %v180
    %v211 = vpop.permute.xlu0 %210
    %214 = vset.pattern.permute.xlu0 0
    %215 = vperm.xlu0 %214, %v181
    %v216 = vpop.permute.xlu0 %215
    %219 = vset.pattern.permute.xlu0 0
    %220 = vperm.xlu0 %219, %v182
    %v221 = vpop.permute.xlu0 %220
    %v223 = vld [vmem:[%s5] sm:$0xff]
    %v224 = vld [vmem:[%s5 + $0x8] sm:$0xff]
    %v225 = vld [vmem:[%s5 + $0x10] sm:$0xff]
    %v226 = vld [vmem:[%s5 + $0x18] sm:$0xff]
    %v227 = vld [vmem:[%s5 + $0x20] sm:$0xff]
    %v228 = vld [vmem:[%s5 + $0x28] sm:$0xff]
    %v229 = vld [vmem:[%s5 + $0x30] sm:$0xff]
    %v230 = vld [vmem:[%s5 + $0x38] sm:$0xff]
    %232 = vset.pattern.permute.xlu0 0
    %233 = vperm.xlu0 %232, %v223
    %v234 = vpop.permute.xlu0 %233
    %237 = vset.pattern.permute.xlu0 0
    %238 = vperm.xlu0 %237, %v224
    %v239 = vpop.permute.xlu0 %238
    %242 = vset.pattern.permute.xlu0 0
    %243 = vperm.xlu0 %242, %v225
    %v244 = vpop.permute.xlu0 %243
    %247 = vset.pattern.permute.xlu0 0
    %248 = vperm.xlu0 %247, %v226
    %v249 = vpop.permute.xlu0 %248
    %252 = vset.pattern.permute.xlu0 0
    %253 = vperm.xlu0 %252, %v227
    %v254 = vpop.permute.xlu0 %253
    %257 = vset.pattern.permute.xlu0 0
    %258 = vperm.xlu0 %257, %v228
    %v259 = vpop.permute.xlu0 %258
    %262 = vset.pattern.permute.xlu0 0
    %263 = vperm.xlu0 %262, %v229
    %v264 = vpop.permute.xlu0 %263
    %267 = vset.pattern.permute.xlu0 0
    %268 = vperm.xlu0 %267, %v230
    %v269 = vpop.permute.xlu0 %268
    %v271 = vpack.c.bf16 %v40, %v39
    %v272 = vpack.c.bf16 %v42, %v41
    %v273 = vpack.c.bf16 %v44, %v43
    %v274 = vpack.c.bf16 %v46, %v45
    %v291 = vunpack.c.l.b16 %v47
    %v292 = vunpack.c.l.b16 %v48
    %v293 = vunpack.c.l.b16 %v49
    %v294 = vunpack.c.l.b16 %v50
    %v295 = vunpack.c.l.b16 %v51
    %v296 = vunpack.c.l.b16 %v52
    %v297 = vunpack.c.l.b16 %v53
    %v298 = vunpack.c.l.b16 %v54
    %v299 = vunpack.c.l.b16 %v55
    %v300 = vunpack.c.l.b16 %v56
    %v301 = vunpack.c.l.b16 %v57
    %v302 = vunpack.c.l.b16 %v58
    %v303 = vunpack.c.l.b16 %v59
    %v304 = vunpack.c.l.b16 %v60
    %v305 = vunpack.c.l.b16 %v61
    %v306 = vunpack.c.l.b16 %v62
    %v307 = vpack.c.b16 %v292, %v291
    %v308 = vpack.c.b16 %v294, %v293
    %v309 = vpack.c.b16 %v296, %v295
    %v310 = vpack.c.b16 %v298, %v297
    %v311 = vpack.c.b16 %v300, %v299
    %v312 = vpack.c.b16 %v302, %v301
    %v313 = vpack.c.b16 %v304, %v303
    %v314 = vpack.c.b16 %v306, %v305
    %vm315 = vcmask 523264
    %v317 = vsel %vm315, %v307, 0
    %v320 = vsel %vm315, %v308, 0
    %v323 = vsel %vm315, %v309, 0
    %v326 = vsel %vm315, %v310, 0
    %v329 = vsel %vm315, %v311, 0
    %v332 = vsel %vm315, %v312, 0
    %v335 = vsel %vm315, %v313, 0
    %v338 = vsel %vm315, %v314, 0
    %340 = vmatprep.subr.bf16.mxu0 0
    %341 = vmatpush1.bf16.msra.mxu0 0
    %342 = vmatprep.subr.bf16.mxu0 0
    %343 = vmatpush1.bf16.msra.mxu0 0
    %344 = vmatprep.subr.bf16.mxu0 0
    %345 = vmatpush1.bf16.msra.mxu0 0
    %346 = vmatprep.subr.bf16.mxu0 0
    %347 = vmatpush1.bf16.msra.mxu0 0
    %348 = vmatprep.subr.bf16.mxu0 0
    %349 = vmatpush1.bf16.msra.mxu0 %v274
    %350 = vmatprep.subr.bf16.mxu0 0
    %351 = vmatpush1.bf16.msra.mxu0 %v273
    %352 = vmatprep.subr.bf16.mxu0 0
    %353 = vmatpush1.bf16.msra.mxu0 %v272
    %354 = vmatprep.subr.bf16.mxu0 0
    %355 = vmatpush1.bf16.msra.mxu0 %v271
    %356 = vmatprep.subr.bf16.mxu0 0
    %357 = vmatpush2.bf16.msra.mxu0 0
    %358 = vmatprep.subr.bf16.mxu0 0
    %359 = vmatpush2.bf16.msra.mxu0 0
    %360 = vmatprep.subr.bf16.mxu0 0
    %361 = vmatpush2.bf16.msra.mxu0 0
    %362 = vmatprep.subr.bf16.mxu0 0
    %363 = vmatpush2.bf16.msra.mxu0 0
    %364 = vmatprep.subr.bf16.mxu0 0
    %365 = vmatpush2.bf16.msra.mxu0 0
    %366 = vmatprep.subr.bf16.mxu0 0
    %367 = vmatpush2.bf16.msra.mxu0 0
    %368 = vmatprep.subr.bf16.mxu0 0
    %369 = vmatpush2.bf16.msra.mxu0 0
    %370 = vmatprep.subr.bf16.mxu0 0
    %371 = vmatpush2.bf16.msra.mxu0 0
    %372 = vmatprep.mubr.bf16.mxu0 0
    %373 = vmatmul.mubr.bf16.gmra.mxu0 %v317
    %v374 = vpop.f32.mrf.mxu0
    %v375 = vadd.f32 0.0, %v374
    %v376 = vpop.f32.mrf.mxu0
    %v377 = vpop.f32.mrf.mxu0
    %v378 = vadd.f32 0.0, %v377
    %v379 = vpop.f32.mrf.mxu0
    %380 = vmatprep.mubr.bf16.mxu0 0
    %381 = vmatmul.mubr.bf16.gmra.mxu0 %v320
    %v382 = vpop.f32.mrf.mxu0
    %v383 = vadd.f32 0.0, %v382
    %v384 = vpop.f32.mrf.mxu0
    %v385 = vpop.f32.mrf.mxu0
    %v386 = vadd.f32 0.0, %v385
    %v387 = vpop.f32.mrf.mxu0
    %388 = vmatprep.mubr.bf16.mxu0 0
    %389 = vmatmul.mubr.bf16.gmra.mxu0 %v323
    %v390 = vpop.f32.mrf.mxu0
    %v391 = vadd.f32 0.0, %v390
    %v392 = vpop.f32.mrf.mxu0
    %v393 = vpop.f32.mrf.mxu0
    %v394 = vadd.f32 0.0, %v393
    %v395 = vpop.f32.mrf.mxu0
    %396 = vmatprep.mubr.bf16.mxu0 0
    %397 = vmatmul.mubr.bf16.gmra.mxu0 %v326
    %v398 = vpop.f32.mrf.mxu0
    %v399 = vadd.f32 0.0, %v398
    %v400 = vpop.f32.mrf.mxu0
    %v401 = vpop.f32.mrf.mxu0
    %v402 = vadd.f32 0.0, %v401
    %v403 = vpop.f32.mrf.mxu0
    %404 = vmatprep.mubr.bf16.mxu0 0
    %405 = vmatmul.mubr.bf16.gmra.mxu0 %v329
    %v406 = vpop.f32.mrf.mxu0
    %v407 = vadd.f32 0.0, %v406
    %v408 = vpop.f32.mrf.mxu0
    %v409 = vpop.f32.mrf.mxu0
    %v410 = vadd.f32 0.0, %v409
    %v411 = vpop.f32.mrf.mxu0
    %412 = vmatprep.mubr.bf16.mxu0 0
    %413 = vmatmul.mubr.bf16.gmra.mxu0 %v332
    %v414 = vpop.f32.mrf.mxu0
    %v415 = vadd.f32 0.0, %v414
    %v416 = vpop.f32.mrf.mxu0
    %v417 = vpop.f32.mrf.mxu0
    %v418 = vadd.f32 0.0, %v417
    %v419 = vpop.f32.mrf.mxu0
    %420 = vmatprep.mubr.bf16.mxu0 0
    %421 = vmatmul.mubr.bf16.gmra.mxu0 %v335
    %v422 = vpop.f32.mrf.mxu0
    %v423 = vadd.f32 0.0, %v422
    %v424 = vpop.f32.mrf.mxu0
    %v425 = vpop.f32.mrf.mxu0
    %v426 = vadd.f32 0.0, %v425
    %v427 = vpop.f32.mrf.mxu0
    %428 = vmatprep.mubr.bf16.mxu0 0
    %429 = vmatmul.mubr.bf16.gmra.mxu0 %v338
    %v430 = vpop.f32.mrf.mxu0
    %v431 = vadd.f32 0.0, %v430
    %v432 = vpop.f32.mrf.mxu0
    %v433 = vpop.f32.mrf.mxu0
    %v434 = vadd.f32 0.0, %v433
    %v435 = vpop.f32.mrf.mxu0
    %436 = vdwg.mxu0
    %v437 = vmul.f32 %v138, %v39
    %v438 = vmul.f32 %v143, %v40
    %v439 = vmul.f32 %v148, %v41
    %v440 = vmul.f32 %v153, %v42
    %v441 = vmul.f32 %v158, %v43
    %v442 = vmul.f32 %v163, %v44
    %v443 = vmul.f32 %v168, %v45
    %v444 = vmul.f32 %v173, %v46
    %v445 = vmul.f32 %v186, %v39
    %v446 = vmul.f32 %v191, %v40
    %v447 = vmul.f32 %v196, %v41
    %v448 = vmul.f32 %v201, %v42
    %v449 = vmul.f32 %v206, %v43
    %v450 = vmul.f32 %v211, %v44
    %v451 = vmul.f32 %v216, %v45
    %v452 = vmul.f32 %v221, %v46
    %v453 = vpack.c.bf16 %v378, %v375
    %v454 = vpack.c.bf16 %v386, %v383
    %v455 = vpack.c.bf16 %v394, %v391
    %v456 = vpack.c.bf16 %v402, %v399
    %v461 = vunpack.c.l.b16 %v453
    %v462 = vunpack.c.h.b16 %v453
    %v463 = vunpack.c.l.b16 %v454
    %v464 = vunpack.c.h.b16 %v454
    %v465 = vunpack.c.l.b16 %v455
    %v466 = vunpack.c.h.b16 %v455
    %v467 = vunpack.c.l.b16 %v456
    %v468 = vunpack.c.h.b16 %v456
    %v469 = vpack.c.b16 %v461, %v461
    %v470 = vpack.c.b16 %v462, %v462
    %v471 = vpack.c.b16 %v463, %v463
    %v472 = vpack.c.b16 %v464, %v464
    %v473 = vpack.c.b16 %v465, %v465
    %v474 = vpack.c.b16 %v466, %v466
    %v475 = vpack.c.b16 %v467, %v467
    %v476 = vpack.c.b16 %v468, %v468
    %485 = vst [vmem:[#allocation2] sm:$0xf] %v469
    %486 = vst [vmem:[#allocation2 + $0x10] sm:$0xf] %v470
    %487 = vst [vmem:[#allocation2 + $0x20] sm:$0xf] %v471
    %488 = vst [vmem:[#allocation2 + $0x30] sm:$0xf] %v472
    %489 = vst [vmem:[#allocation2 + $0x40] sm:$0xf] %v473
    %490 = vst [vmem:[#allocation2 + $0x50] sm:$0xf] %v474
    %491 = vst [vmem:[#allocation2 + $0x60] sm:$0xf] %v475
    %492 = vst [vmem:[#allocation2 + $0x70] sm:$0xf] %v476
    %v493 = vpack.c.bf16 %v438, %v437
    %v494 = vpack.c.bf16 %v440, %v439
    %v495 = vpack.c.bf16 %v442, %v441
    %v496 = vpack.c.bf16 %v444, %v443
    %v501 = vunpack.c.l.b16 %v493
    %v502 = vunpack.c.h.b16 %v493
    %v503 = vunpack.c.l.b16 %v494
    %v504 = vunpack.c.h.b16 %v494
    %v505 = vunpack.c.l.b16 %v495
    %v506 = vunpack.c.h.b16 %v495
    %v507 = vunpack.c.l.b16 %v496
    %v508 = vunpack.c.h.b16 %v496
    %v509 = vpack.c.b16 %v501, %v501
    %v510 = vpack.c.b16 %v502, %v502
    %v511 = vpack.c.b16 %v503, %v503
    %v512 = vpack.c.b16 %v504, %v504
    %v513 = vpack.c.b16 %v505, %v505
    %v514 = vpack.c.b16 %v506, %v506
    %v515 = vpack.c.b16 %v507, %v507
    %v516 = vpack.c.b16 %v508, %v508
    %525 = vst [vmem:[#allocation2 + $0x4] sm:$0xf] %v509
    %526 = vst [vmem:[#allocation2 + $0x14] sm:$0xf] %v510
    %527 = vst [vmem:[#allocation2 + $0x24] sm:$0xf] %v511
    %528 = vst [vmem:[#allocation2 + $0x34] sm:$0xf] %v512
    %529 = vst [vmem:[#allocation2 + $0x44] sm:$0xf] %v513
    %530 = vst [vmem:[#allocation2 + $0x54] sm:$0xf] %v514
    %531 = vst [vmem:[#allocation2 + $0x64] sm:$0xf] %v515
    %532 = vst [vmem:[#allocation2 + $0x74] sm:$0xf] %v516
    %v533 = vpack.c.bf16 %v410, %v407
    %v534 = vpack.c.bf16 %v418, %v415
    %v535 = vpack.c.bf16 %v426, %v423
    %v536 = vpack.c.bf16 %v434, %v431
    %v541 = vunpack.c.l.b16 %v533
    %v542 = vunpack.c.h.b16 %v533
    %v543 = vunpack.c.l.b16 %v534
    %v544 = vunpack.c.h.b16 %v534
    %v545 = vunpack.c.l.b16 %v535
    %v546 = vunpack.c.h.b16 %v535
    %v547 = vunpack.c.l.b16 %v536
    %v548 = vunpack.c.h.b16 %v536
    %v549 = vpack.c.b16 %v541, %v541
    %v550 = vpack.c.b16 %v542, %v542
    %v551 = vpack.c.b16 %v543, %v543
    %v552 = vpack.c.b16 %v544, %v544
    %v553 = vpack.c.b16 %v545, %v545
    %v554 = vpack.c.b16 %v546, %v546
    %v555 = vpack.c.b16 %v547, %v547
    %v556 = vpack.c.b16 %v548, %v548
    %565 = vst [vmem:[#allocation2 + $0x8] sm:$0xf] %v549
    %566 = vst [vmem:[#allocation2 + $0x18] sm:$0xf] %v550
    %567 = vst [vmem:[#allocation2 + $0x28] sm:$0xf] %v551
    %568 = vst [vmem:[#allocation2 + $0x38] sm:$0xf] %v552
    %569 = vst [vmem:[#allocation2 + $0x48] sm:$0xf] %v553
    %570 = vst [vmem:[#allocation2 + $0x58] sm:$0xf] %v554
    %571 = vst [vmem:[#allocation2 + $0x68] sm:$0xf] %v555
    %572 = vst [vmem:[#allocation2 + $0x78] sm:$0xf] %v556
    %v573 = vpack.c.bf16 %v446, %v445
    %v574 = vpack.c.bf16 %v448, %v447
    %v575 = vpack.c.bf16 %v450, %v449
    %v576 = vpack.c.bf16 %v452, %v451
    %v581 = vunpack.c.l.b16 %v573
    %v582 = vunpack.c.h.b16 %v573
    %v583 = vunpack.c.l.b16 %v574
    %v584 = vunpack.c.h.b16 %v574
    %v585 = vunpack.c.l.b16 %v575
    %v586 = vunpack.c.h.b16 %v575
    %v587 = vunpack.c.l.b16 %v576
    %v588 = vunpack.c.h.b16 %v576
    %v589 = vpack.c.b16 %v581, %v581
    %v590 = vpack.c.b16 %v582, %v582
    %v591 = vpack.c.b16 %v583, %v583
    %v592 = vpack.c.b16 %v584, %v584
    %v593 = vpack.c.b16 %v585, %v585
    %v594 = vpack.c.b16 %v586, %v586
    %v595 = vpack.c.b16 %v587, %v587
    %v596 = vpack.c.b16 %v588, %v588
    %605 = vst [vmem:[#allocation2 + $0xc] sm:$0xf] %v589
    %606 = vst [vmem:[#allocation2 + $0x1c] sm:$0xf] %v590
    %607 = vst [vmem:[#allocation2 + $0x2c] sm:$0xf] %v591
    %608 = vst [vmem:[#allocation2 + $0x3c] sm:$0xf] %v592
    %609 = vst [vmem:[#allocation2 + $0x4c] sm:$0xf] %v593
    %610 = vst [vmem:[#allocation2 + $0x5c] sm:$0xf] %v594
    %611 = vst [vmem:[#allocation2 + $0x6c] sm:$0xf] %v595
    %612 = vst [vmem:[#allocation2 + $0x7c] sm:$0xf] %v596
    %v613 = vld [vmem:[#allocation2] sm:$0xff]
    %v614 = vld [vmem:[#allocation2 + $0x8] sm:$0xff]
    %v615 = vld [vmem:[#allocation2 + $0x10] sm:$0xff]
    %v616 = vld [vmem:[#allocation2 + $0x18] sm:$0xff]
    %v617 = vld [vmem:[#allocation2 + $0x20] sm:$0xff]
    %v618 = vld [vmem:[#allocation2 + $0x28] sm:$0xff]
    %v619 = vld [vmem:[#allocation2 + $0x30] sm:$0xff]
    %v620 = vld [vmem:[#allocation2 + $0x38] sm:$0xff]
    %v621 = vld [vmem:[#allocation2 + $0x40] sm:$0xff]
    %v622 = vld [vmem:[#allocation2 + $0x48] sm:$0xff]
    %v623 = vld [vmem:[#allocation2 + $0x50] sm:$0xff]
    %v624 = vld [vmem:[#allocation2 + $0x58] sm:$0xff]
    %v625 = vld [vmem:[#allocation2 + $0x60] sm:$0xff]
    %v626 = vld [vmem:[#allocation2 + $0x68] sm:$0xff]
    %v627 = vld [vmem:[#allocation2 + $0x70] sm:$0xff]
    %v628 = vld [vmem:[#allocation2 + $0x78] sm:$0xff]
    %v629 = vmul.f32 %v39, 0.6666667
    %v630 = vmul.f32 %v40, 0.6666667
    %v631 = vmul.f32 %v41, 0.6666667
    %v632 = vmul.f32 %v42, 0.6666667
    %v633 = vmul.f32 %v43, 0.6666667
    %v634 = vmul.f32 %v44, 0.6666667
    %v635 = vmul.f32 %v45, 0.6666667
    %v636 = vmul.f32 %v46, 0.6666667
    %v653 = vunpack.c.l.b16 %v613
    %v654 = vunpack.c.h.b16 %v613
    %v655 = vunpack.c.l.b16 %v614
    %v656 = vunpack.c.h.b16 %v614
    %v657 = vunpack.c.l.b16 %v615
    %v658 = vunpack.c.h.b16 %v615
    %v659 = vunpack.c.l.b16 %v616
    %v660 = vunpack.c.h.b16 %v616
    %v661 = vunpack.c.l.b16 %v617
    %v662 = vunpack.c.h.b16 %v617
    %v663 = vunpack.c.l.b16 %v618
    %v664 = vunpack.c.h.b16 %v618
    %v665 = vunpack.c.l.b16 %v619
    %v666 = vunpack.c.h.b16 %v619
    %v667 = vunpack.c.l.b16 %v620
    %v668 = vunpack.c.h.b16 %v620
    %v669 = vunpack.c.l.b16 %v621
    %v670 = vunpack.c.h.b16 %v621
    %v671 = vunpack.c.l.b16 %v622
    %v672 = vunpack.c.h.b16 %v622
    %v673 = vunpack.c.l.b16 %v623
    %v674 = vunpack.c.h.b16 %v623
    %v675 = vunpack.c.l.b16 %v624
    %v676 = vunpack.c.h.b16 %v624
    %v677 = vunpack.c.l.b16 %v625
    %v678 = vunpack.c.h.b16 %v625
    %v679 = vunpack.c.l.b16 %v626
    %v680 = vunpack.c.h.b16 %v626
    %v681 = vunpack.c.l.b16 %v627
    %v682 = vunpack.c.h.b16 %v627
    %v683 = vunpack.c.l.b16 %v628
    %v684 = vunpack.c.h.b16 %v628
    %v685 = vpack.c.b16 %v657, %v653
    %v686 = vpack.c.b16 %v658, %v654
    %v687 = vpack.c.b16 %v659, %v655
    %v688 = vpack.c.b16 %v660, %v656
    %v689 = vpack.c.b16 %v665, %v661
    %v690 = vpack.c.b16 %v666, %v662
    %v691 = vpack.c.b16 %v667, %v663
    %v692 = vpack.c.b16 %v668, %v664
    %v693 = vpack.c.b16 %v673, %v669
    %v694 = vpack.c.b16 %v674, %v670
    %v695 = vpack.c.b16 %v675, %v671
    %v696 = vpack.c.b16 %v676, %v672
    %v697 = vpack.c.b16 %v681, %v677
    %v698 = vpack.c.b16 %v682, %v678
    %v699 = vpack.c.b16 %v683, %v679
    %v700 = vpack.c.b16 %v684, %v680
    %v781 = vunpack.c.l.b16 %v63
    %v782 = vunpack.c.l.b16 %v64
    %v783 = vunpack.c.l.b16 %v65
    %v784 = vunpack.c.l.b16 %v66
    %v785 = vunpack.c.l.b16 %v67
    %v786 = vunpack.c.l.b16 %v68
    %v787 = vunpack.c.l.b16 %v69
    %v788 = vunpack.c.l.b16 %v70
    %v789 = vunpack.c.l.b16 %v71
    %v790 = vunpack.c.l.b16 %v72
    %v791 = vunpack.c.l.b16 %v73
    %v792 = vunpack.c.l.b16 %v74
    %v793 = vunpack.c.l.b16 %v75
    %v794 = vunpack.c.l.b16 %v76
    %v795 = vunpack.c.l.b16 %v77
    %v796 = vunpack.c.l.b16 %v78
    %v797 = vunpack.c.l.b16 %v79
    %v798 = vunpack.c.l.b16 %v80
    %v799 = vunpack.c.l.b16 %v81
    %v800 = vunpack.c.l.b16 %v82
    %v801 = vunpack.c.l.b16 %v83
    %v802 = vunpack.c.l.b16 %v84
    %v803 = vunpack.c.l.b16 %v85
    %v804 = vunpack.c.l.b16 %v86
    %v805 = vunpack.c.l.b16 %v87
    %v806 = vunpack.c.l.b16 %v88
    %v807 = vunpack.c.l.b16 %v89
    %v808 = vunpack.c.l.b16 %v90
    %v809 = vunpack.c.l.b16 %v91
    %v810 = vunpack.c.l.b16 %v92
    %v811 = vunpack.c.l.b16 %v93
    %v812 = vunpack.c.l.b16 %v94
    %v813 = vunpack.c.l.b16 %v95
    %v814 = vunpack.c.l.b16 %v96
    %v815 = vunpack.c.l.b16 %v97
    %v816 = vunpack.c.l.b16 %v98
    %v817 = vunpack.c.l.b16 %v99
    %v818 = vunpack.c.l.b16 %v100
    %v819 = vunpack.c.l.b16 %v101
    %v820 = vunpack.c.l.b16 %v102
    %v821 = vunpack.c.l.b16 %v103
    %v822 = vunpack.c.l.b16 %v104
    %v823 = vunpack.c.l.b16 %v105
    %v824 = vunpack.c.l.b16 %v106
    %v825 = vunpack.c.l.b16 %v107
    %v826 = vunpack.c.l.b16 %v108
    %v827 = vunpack.c.l.b16 %v109
    %v828 = vunpack.c.l.b16 %v110
    %v829 = vunpack.c.l.b16 %v111
    %v830 = vunpack.c.l.b16 %v112
    %v831 = vunpack.c.l.b16 %v113
    %v832 = vunpack.c.l.b16 %v114
    %v833 = vunpack.c.l.b16 %v115
    %v834 = vunpack.c.l.b16 %v116
    %v835 = vunpack.c.l.b16 %v117
    %v836 = vunpack.c.l.b16 %v118
    %v837 = vunpack.c.l.b16 %v119
    %v838 = vunpack.c.l.b16 %v120
    %v839 = vunpack.c.l.b16 %v121
    %v840 = vunpack.c.l.b16 %v122
    %v841 = vunpack.c.l.b16 %v123
    %v842 = vunpack.c.l.b16 %v124
    %v843 = vunpack.c.l.b16 %v125
    %v844 = vunpack.c.l.b16 %v126
    %v845 = vpack.c.b16 %v782, %v781
    %v846 = vpack.c.b16 %v784, %v783
    %v847 = vpack.c.b16 %v786, %v785
    %v848 = vpack.c.b16 %v788, %v787
    %v849 = vpack.c.b16 %v790, %v789
    %v850 = vpack.c.b16 %v792, %v791
    %v851 = vpack.c.b16 %v794, %v793
    %v852 = vpack.c.b16 %v796, %v795
    %v853 = vpack.c.b16 %v798, %v797
    %v854 = vpack.c.b16 %v800, %v799
    %v855 = vpack.c.b16 %v802, %v801
    %v856 = vpack.c.b16 %v804, %v803
    %v857 = vpack.c.b16 %v806, %v805
    %v858 = vpack.c.b16 %v808, %v807
    %v859 = vpack.c.b16 %v810, %v809
    %v860 = vpack.c.b16 %v812, %v811
    %v861 = vpack.c.b16 %v814, %v813
    %v862 = vpack.c.b16 %v816, %v815
    %v863 = vpack.c.b16 %v818, %v817
    %v864 = vpack.c.b16 %v820, %v819
    %v865 = vpack.c.b16 %v822, %v821
    %v866 = vpack.c.b16 %v824, %v823
    %v867 = vpack.c.b16 %v826, %v825
    %v868 = vpack.c.b16 %v828, %v827
    %v869 = vpack.c.b16 %v830, %v829
    %v870 = vpack.c.b16 %v832, %v831
    %v871 = vpack.c.b16 %v834, %v833
    %v872 = vpack.c.b16 %v836, %v835
    %v873 = vpack.c.b16 %v838, %v837
    %v874 = vpack.c.b16 %v840, %v839
    %v875 = vpack.c.b16 %v842, %v841
    %v876 = vpack.c.b16 %v844, %v843
    %909 = vmatprep.subr.bf16.mxu0 0
    %910 = vmatpush1.bf16.msra.mxu0 %v852
    %911 = vmatprep.subr.bf16.mxu0 0
    %912 = vmatpush1.bf16.msra.mxu0 %v851
    %913 = vmatprep.subr.bf16.mxu0 0
    %914 = vmatpush1.bf16.msra.mxu0 %v850
    %915 = vmatprep.subr.bf16.mxu0 0
    %916 = vmatpush1.bf16.msra.mxu0 %v849
    %917 = vmatprep.subr.bf16.mxu0 0
    %918 = vmatpush1.bf16.msra.mxu0 %v848
    %919 = vmatprep.subr.bf16.mxu0 0
    %920 = vmatpush1.bf16.msra.mxu0 %v847
    %921 = vmatprep.subr.bf16.mxu0 0
    %922 = vmatpush1.bf16.msra.mxu0 %v846
    %923 = vmatprep.subr.bf16.mxu0 0
    %924 = vmatpush1.bf16.msra.mxu0 %v845
    %925 = vmatprep.subr.bf16.mxu0 0
    %926 = vmatpush2.bf16.msra.mxu0 %v860
    %927 = vmatprep.subr.bf16.mxu0 0
    %928 = vmatpush2.bf16.msra.mxu0 %v859
    %929 = vmatprep.subr.bf16.mxu0 0
    %930 = vmatpush2.bf16.msra.mxu0 %v858
    %931 = vmatprep.subr.bf16.mxu0 0
    %932 = vmatpush2.bf16.msra.mxu0 %v857
    %933 = vmatprep.subr.bf16.mxu0 0
    %934 = vmatpush2.bf16.msra.mxu0 %v856
    %935 = vmatprep.subr.bf16.mxu0 0
    %936 = vmatpush2.bf16.msra.mxu0 %v855
    %937 = vmatprep.subr.bf16.mxu0 0
    %938 = vmatpush2.bf16.msra.mxu0 %v854
    %939 = vmatprep.subr.bf16.mxu0 0
    %940 = vmatpush2.bf16.msra.mxu0 %v853
    %941 = vmatprep.mubr.bf16.mxu0 %v686
    %942 = vmatmul.mubr.bf16.gmra.mxu0 %v685
    %v943 = vpop.f32.mrf.mxu0
    %v944 = vadd.f32 %v39, %v943
    %v945 = vpop.f32.mrf.mxu0
    %v946 = vpop.f32.mrf.mxu0
    %v947 = vadd.f32 %v40, %v946
    %v948 = vpop.f32.mrf.mxu0
    %949 = vmatprep.mubr.bf16.mxu0 %v690
    %950 = vmatmul.mubr.bf16.gmra.mxu0 %v689
    %v951 = vpop.f32.mrf.mxu0
    %v952 = vadd.f32 %v41, %v951
    %v953 = vpop.f32.mrf.mxu0
    %v954 = vpop.f32.mrf.mxu0
    %v955 = vadd.f32 %v42, %v954
    %v956 = vpop.f32.mrf.mxu0
    %957 = vmatprep.mubr.bf16.mxu0 %v694
    %958 = vmatmul.mubr.bf16.gmra.mxu0 %v693
    %v959 = vpop.f32.mrf.mxu0
    %v960 = vadd.f32 %v43, %v959
    %v961 = vpop.f32.mrf.mxu0
    %v962 = vpop.f32.mrf.mxu0
    %v963 = vadd.f32 %v44, %v962
    %v964 = vpop.f32.mrf.mxu0
    %965 = vmatprep.mubr.bf16.mxu0 %v698
    %966 = vmatmul.mubr.bf16.gmra.mxu0 %v697
    %v967 = vpop.f32.mrf.mxu0
    %v968 = vadd.f32 %v45, %v967
    %v969 = vpop.f32.mrf.mxu0
    %v970 = vpop.f32.mrf.mxu0
    %v971 = vadd.f32 %v46, %v970
    %v972 = vpop.f32.mrf.mxu0
    %973 = vdwg.mxu0
    %974 = vmatprep.subr.bf16.mxu0 0
    %975 = vmatpush1.bf16.msra.mxu0 %v868
    %976 = vmatprep.subr.bf16.mxu0 0
    %977 = vmatpush1.bf16.msra.mxu0 %v867
    %978 = vmatprep.subr.bf16.mxu0 0
    %979 = vmatpush1.bf16.msra.mxu0 %v866
    %980 = vmatprep.subr.bf16.mxu0 0
    %981 = vmatpush1.bf16.msra.mxu0 %v865
    %982 = vmatprep.subr.bf16.mxu0 0
    %983 = vmatpush1.bf16.msra.mxu0 %v864
    %984 = vmatprep.subr.bf16.mxu0 0
    %985 = vmatpush1.bf16.msra.mxu0 %v863
    %986 = vmatprep.subr.bf16.mxu0 0
    %987 = vmatpush1.bf16.msra.mxu0 %v862
    %988 = vmatprep.subr.bf16.mxu0 0
    %989 = vmatpush1.bf16.msra.mxu0 %v861
    %990 = vmatprep.subr.bf16.mxu0 0
    %991 = vmatpush2.bf16.msra.mxu0 %v876
    %992 = vmatprep.subr.bf16.mxu0 0
    %993 = vmatpush2.bf16.msra.mxu0 %v875
    %994 = vmatprep.subr.bf16.mxu0 0
    %995 = vmatpush2.bf16.msra.mxu0 %v874
    %996 = vmatprep.subr.bf16.mxu0 0
    %997 = vmatpush2.bf16.msra.mxu0 %v873
    %998 = vmatprep.subr.bf16.mxu0 0
    %999 = vmatpush2.bf16.msra.mxu0 %v872
    %1000 = vmatprep.subr.bf16.mxu0 0
    %1001 = vmatpush2.bf16.msra.mxu0 %v871
    %1002 = vmatprep.subr.bf16.mxu0 0
    %1003 = vmatpush2.bf16.msra.mxu0 %v870
    %1004 = vmatprep.subr.bf16.mxu0 0
    %1005 = vmatpush2.bf16.msra.mxu0 %v869
    %1006 = vmatprep.mubr.bf16.mxu0 %v688
    %1007 = vmatmul.mubr.bf16.gmra.mxu0 %v687
    %v1008 = vpop.f32.mrf.mxu0
    %v1009 = vadd.f32 %v944, %v1008
    %v1010 = vpop.f32.mrf.mxu0
    %v1011 = vpop.f32.mrf.mxu0
    %v1012 = vadd.f32 %v947, %v1011
    %v1013 = vpop.f32.mrf.mxu0
    %1014 = vmatprep.mubr.bf16.mxu0 %v692
    %1015 = vmatmul.mubr.bf16.gmra.mxu0 %v691
    %v1016 = vpop.f32.mrf.mxu0
    %v1017 = vadd.f32 %v952, %v1016
    %v1018 = vpop.f32.mrf.mxu0
    %v1019 = vpop.f32.mrf.mxu0
    %v1020 = vadd.f32 %v955, %v1019
    %v1021 = vpop.f32.mrf.mxu0
    %1022 = vmatprep.mubr.bf16.mxu0 %v696
    %1023 = vmatmul.mubr.bf16.gmra.mxu0 %v695
    %v1024 = vpop.f32.mrf.mxu0
    %v1025 = vadd.f32 %v960, %v1024
    %v1026 = vpop.f32.mrf.mxu0
    %v1027 = vpop.f32.mrf.mxu0
    %v1028 = vadd.f32 %v963, %v1027
    %v1029 = vpop.f32.mrf.mxu0
    %1030 = vmatprep.mubr.bf16.mxu0 %v700
    %1031 = vmatmul.mubr.bf16.gmra.mxu0 %v699
    %v1032 = vpop.f32.mrf.mxu0
    %v1033 = vadd.f32 %v968, %v1032
    %v1034 = vpop.f32.mrf.mxu0
    %v1035 = vpop.f32.mrf.mxu0
    %v1036 = vadd.f32 %v971, %v1035
    %v1037 = vpop.f32.mrf.mxu0
    %1038 = vdwg.mxu0
    %v1039 = vmul.f32 %v234, %v1009
    %v1040 = vmul.f32 %v239, %v1012
    %v1041 = vmul.f32 %v244, %v1017
    %v1042 = vmul.f32 %v249, %v1020
    %v1043 = vmul.f32 %v254, %v1025
    %v1044 = vmul.f32 %v259, %v1028
    %v1045 = vmul.f32 %v264, %v1033
    %v1046 = vmul.f32 %v269, %v1036
    %v1047 = vadd.f32 %v629, %v1039
    %v1048 = vadd.f32 %v630, %v1040
    %v1049 = vadd.f32 %v631, %v1041
    %v1050 = vadd.f32 %v632, %v1042
    %v1051 = vadd.f32 %v633, %v1043
    %v1052 = vadd.f32 %v634, %v1044
    %v1053 = vadd.f32 %v635, %v1045
    %v1054 = vadd.f32 %v636, %v1046
    %v1055 = vpack.c.bf16 %v1048, %v1047
    %v1056 = vpack.c.bf16 %v1050, %v1049
    %v1057 = vpack.c.bf16 %v1052, %v1051
    %v1058 = vpack.c.bf16 %v1054, %v1053
    %1059 = vmatprep.subr.bf16.mxu0 0
    %1060 = vmatpush1.bf16.msra.mxu0 0
    %1061 = vmatprep.subr.bf16.mxu0 0
    %1062 = vmatpush1.bf16.msra.mxu0 0
    %1063 = vmatprep.subr.bf16.mxu0 0
    %1064 = vmatpush1.bf16.msra.mxu0 0
    %1065 = vmatprep.subr.bf16.mxu0 0
    %1066 = vmatpush1.bf16.msra.mxu0 0
    %1067 = vmatprep.subr.bf16.mxu0 0
    %1068 = vmatpush1.bf16.msra.mxu0 %v1058
    %1069 = vmatprep.subr.bf16.mxu0 0
    %1070 = vmatpush1.bf16.msra.mxu0 %v1057
    %1071 = vmatprep.subr.bf16.mxu0 0
    %1072 = vmatpush1.bf16.msra.mxu0 %v1056
    %1073 = vmatprep.subr.bf16.mxu0 0
    %1074 = vmatpush1.bf16.msra.mxu0 %v1055
    %1075 = vmatprep.subr.bf16.mxu0 0
    %1076 = vmatpush2.bf16.msra.mxu0 0
    %1077 = vmatprep.subr.bf16.mxu0 0
    %1078 = vmatpush2.bf16.msra.mxu0 0
    %1079 = vmatprep.subr.bf16.mxu0 0
    %1080 = vmatpush2.bf16.msra.mxu0 0
    %1081 = vmatprep.subr.bf16.mxu0 0
    %1082 = vmatpush2.bf16.msra.mxu0 0
    %1083 = vmatprep.subr.bf16.mxu0 0
    %1084 = vmatpush2.bf16.msra.mxu0 0
    %1085 = vmatprep.subr.bf16.mxu0 0
    %1086 = vmatpush2.bf16.msra.mxu0 0
    %1087 = vmatprep.subr.bf16.mxu0 0
    %1088 = vmatpush2.bf16.msra.mxu0 0
    %1089 = vmatprep.subr.bf16.mxu0 0
    %1090 = vmatpush2.bf16.msra.mxu0 0
    %1091 = vmatprep.mubr.bf16.mxu0 0
    %1092 = vmatmul.mubr.bf16.gmra.mxu0 %v317
    %v1093 = vpop.f32.mrf.mxu0
    %v1094 = vadd.f32 0.0, %v1093
    %v1095 = vpop.f32.mrf.mxu0
    %v1096 = vpop.f32.mrf.mxu0
    %v1097 = vadd.f32 0.0, %v1096
    %v1098 = vpop.f32.mrf.mxu0
    %1099 = vmatprep.mubr.bf16.mxu0 0
    %1100 = vmatmul.mubr.bf16.gmra.mxu0 %v320
    %v1101 = vpop.f32.mrf.mxu0
    %v1102 = vadd.f32 0.0, %v1101
    %v1103 = vpop.f32.mrf.mxu0
    %v1104 = vpop.f32.mrf.mxu0
    %v1105 = vadd.f32 0.0, %v1104
    %v1106 = vpop.f32.mrf.mxu0
    %1107 = vmatprep.mubr.bf16.mxu0 0
    %1108 = vmatmul.mubr.bf16.gmra.mxu0 %v323
    %v1109 = vpop.f32.mrf.mxu0
    %v1110 = vadd.f32 0.0, %v1109
    %v1111 = vpop.f32.mrf.mxu0
    %v1112 = vpop.f32.mrf.mxu0
    %v1113 = vadd.f32 0.0, %v1112
    %v1114 = vpop.f32.mrf.mxu0
    %1115 = vmatprep.mubr.bf16.mxu0 0
    %1116 = vmatmul.mubr.bf16.gmra.mxu0 %v326
    %v1117 = vpop.f32.mrf.mxu0
    %v1118 = vadd.f32 0.0, %v1117
    %v1119 = vpop.f32.mrf.mxu0
    %v1120 = vpop.f32.mrf.mxu0
    %v1121 = vadd.f32 0.0, %v1120
    %v1122 = vpop.f32.mrf.mxu0
    %1123 = vmatprep.mubr.bf16.mxu0 0
    %1124 = vmatmul.mubr.bf16.gmra.mxu0 %v329
    %v1125 = vpop.f32.mrf.mxu0
    %v1126 = vadd.f32 0.0, %v1125
    %v1127 = vpop.f32.mrf.mxu0
    %v1128 = vpop.f32.mrf.mxu0
    %v1129 = vadd.f32 0.0, %v1128
    %v1130 = vpop.f32.mrf.mxu0
    %1131 = vmatprep.mubr.bf16.mxu0 0
    %1132 = vmatmul.mubr.bf16.gmra.mxu0 %v332
    %v1133 = vpop.f32.mrf.mxu0
    %v1134 = vadd.f32 0.0, %v1133
    %v1135 = vpop.f32.mrf.mxu0
    %v1136 = vpop.f32.mrf.mxu0
    %v1137 = vadd.f32 0.0, %v1136
    %v1138 = vpop.f32.mrf.mxu0
    %1139 = vmatprep.mubr.bf16.mxu0 0
    %1140 = vmatmul.mubr.bf16.gmra.mxu0 %v335
    %v1141 = vpop.f32.mrf.mxu0
    %v1142 = vadd.f32 0.0, %v1141
    %v1143 = vpop.f32.mrf.mxu0
    %v1144 = vpop.f32.mrf.mxu0
    %v1145 = vadd.f32 0.0, %v1144
    %v1146 = vpop.f32.mrf.mxu0
    %1147 = vmatprep.mubr.bf16.mxu0 0
    %1148 = vmatmul.mubr.bf16.gmra.mxu0 %v338
    %v1149 = vpop.f32.mrf.mxu0
    %v1150 = vadd.f32 0.0, %v1149
    %v1151 = vpop.f32.mrf.mxu0
    %v1152 = vpop.f32.mrf.mxu0
    %v1153 = vadd.f32 0.0, %v1152
    %v1154 = vpop.f32.mrf.mxu0
    %1155 = vdwg.mxu0
    %v1156 = vmul.f32 %v138, %v1047
    %v1157 = vmul.f32 %v143, %v1048
    %v1158 = vmul.f32 %v148, %v1049
    %v1159 = vmul.f32 %v153, %v1050
    %v1160 = vmul.f32 %v158, %v1051
    %v1161 = vmul.f32 %v163, %v1052
    %v1162 = vmul.f32 %v168, %v1053
    %v1163 = vmul.f32 %v173, %v1054
    %v1164 = vmul.f32 %v186, %v1047
    %v1165 = vmul.f32 %v191, %v1048
    %v1166 = vmul.f32 %v196, %v1049
    %v1167 = vmul.f32 %v201, %v1050
    %v1168 = vmul.f32 %v206, %v1051
    %v1169 = vmul.f32 %v211, %v1052
    %v1170 = vmul.f32 %v216, %v1053
    %v1171 = vmul.f32 %v221, %v1054
    %v1172 = vpack.c.bf16 %v1097, %v1094
    %v1173 = vpack.c.bf16 %v1105, %v1102
    %v1174 = vpack.c.bf16 %v1113, %v1110
    %v1175 = vpack.c.bf16 %v1121, %v1118
    %v1180 = vunpack.c.l.b16 %v1172
    %v1181 = vunpack.c.h.b16 %v1172
    %v1182 = vunpack.c.l.b16 %v1173
    %v1183 = vunpack.c.h.b16 %v1173
    %v1184 = vunpack.c.l.b16 %v1174
    %v1185 = vunpack.c.h.b16 %v1174
    %v1186 = vunpack.c.l.b16 %v1175
    %v1187 = vunpack.c.h.b16 %v1175
    %v1188 = vpack.c.b16 %v1180, %v1180
    %v1189 = vpack.c.b16 %v1181, %v1181
    %v1190 = vpack.c.b16 %v1182, %v1182
    %v1191 = vpack.c.b16 %v1183, %v1183
    %v1192 = vpack.c.b16 %v1184, %v1184
    %v1193 = vpack.c.b16 %v1185, %v1185
    %v1194 = vpack.c.b16 %v1186, %v1186
    %v1195 = vpack.c.b16 %v1187, %v1187
    %1204 = vst [vmem:[#allocation2] sm:$0xf] %v1188
    %1205 = vst [vmem:[#allocation2 + $0x10] sm:$0xf] %v1189
    %1206 = vst [vmem:[#allocation2 + $0x20] sm:$0xf] %v1190
    %1207 = vst [vmem:[#allocation2 + $0x30] sm:$0xf] %v1191
    %1208 = vst [vmem:[#allocation2 + $0x40] sm:$0xf] %v1192
    %1209 = vst [vmem:[#allocation2 + $0x50] sm:$0xf] %v1193
    %1210 = vst [vmem:[#allocation2 + $0x60] sm:$0xf] %v1194
    %1211 = vst [vmem:[#allocation2 + $0x70] sm:$0xf] %v1195
    %v1212 = vpack.c.bf16 %v1157, %v1156
    %v1213 = vpack.c.bf16 %v1159, %v1158
    %v1214 = vpack.c.bf16 %v1161, %v1160
    %v1215 = vpack.c.bf16 %v1163, %v1162
    %v1220 = vunpack.c.l.b16 %v1212
    %v1221 = vunpack.c.h.b16 %v1212
    %v1222 = vunpack.c.l.b16 %v1213
    %v1223 = vunpack.c.h.b16 %v1213
    %v1224 = vunpack.c.l.b16 %v1214
    %v1225 = vunpack.c.h.b16 %v1214
    %v1226 = vunpack.c.l.b16 %v1215
    %v1227 = vunpack.c.h.b16 %v1215
    %v1228 = vpack.c.b16 %v1220, %v1220
    %v1229 = vpack.c.b16 %v1221, %v1221
    %v1230 = vpack.c.b16 %v1222, %v1222
    %v1231 = vpack.c.b16 %v1223, %v1223
    %v1232 = vpack.c.b16 %v1224, %v1224
    %v1233 = vpack.c.b16 %v1225, %v1225
    %v1234 = vpack.c.b16 %v1226, %v1226
    %v1235 = vpack.c.b16 %v1227, %v1227
    %1244 = vst [vmem:[#allocation2 + $0x4] sm:$0xf] %v1228
    %1245 = vst [vmem:[#allocation2 + $0x14] sm:$0xf] %v1229
    %1246 = vst [vmem:[#allocation2 + $0x24] sm:$0xf] %v1230
    %1247 = vst [vmem:[#allocation2 + $0x34] sm:$0xf] %v1231
    %1248 = vst [vmem:[#allocation2 + $0x44] sm:$0xf] %v1232
    %1249 = vst [vmem:[#allocation2 + $0x54] sm:$0xf] %v1233
    %1250 = vst [vmem:[#allocation2 + $0x64] sm:$0xf] %v1234
    %1251 = vst [vmem:[#allocation2 + $0x74] sm:$0xf] %v1235
    %v1252 = vpack.c.bf16 %v1129, %v1126
    %v1253 = vpack.c.bf16 %v1137, %v1134
    %v1254 = vpack.c.bf16 %v1145, %v1142
    %v1255 = vpack.c.bf16 %v1153, %v1150
    %v1260 = vunpack.c.l.b16 %v1252
    %v1261 = vunpack.c.h.b16 %v1252
    %v1262 = vunpack.c.l.b16 %v1253
    %v1263 = vunpack.c.h.b16 %v1253
    %v1264 = vunpack.c.l.b16 %v1254
    %v1265 = vunpack.c.h.b16 %v1254
    %v1266 = vunpack.c.l.b16 %v1255
    %v1267 = vunpack.c.h.b16 %v1255
    %v1268 = vpack.c.b16 %v1260, %v1260
    %v1269 = vpack.c.b16 %v1261, %v1261
    %v1270 = vpack.c.b16 %v1262, %v1262
    %v1271 = vpack.c.b16 %v1263, %v1263
    %v1272 = vpack.c.b16 %v1264, %v1264
    %v1273 = vpack.c.b16 %v1265, %v1265
    %v1274 = vpack.c.b16 %v1266, %v1266
    %v1275 = vpack.c.b16 %v1267, %v1267
    %1284 = vst [vmem:[#allocation2 + $0x8] sm:$0xf] %v1268
    %1285 = vst [vmem:[#allocation2 + $0x18] sm:$0xf] %v1269
    %1286 = vst [vmem:[#allocation2 + $0x28] sm:$0xf] %v1270
    %1287 = vst [vmem:[#allocation2 + $0x38] sm:$0xf] %v1271
    %1288 = vst [vmem:[#allocation2 + $0x48] sm:$0xf] %v1272
    %1289 = vst [vmem:[#allocation2 + $0x58] sm:$0xf] %v1273
    %1290 = vst [vmem:[#allocation2 + $0x68] sm:$0xf] %v1274
    %1291 = vst [vmem:[#allocation2 + $0x78] sm:$0xf] %v1275
    %v1292 = vpack.c.bf16 %v1165, %v1164
    %v1293 = vpack.c.bf16 %v1167, %v1166
    %v1294 = vpack.c.bf16 %v1169, %v1168
    %v1295 = vpack.c.bf16 %v1171, %v1170
    %v1300 = vunpack.c.l.b16 %v1292
    %v1301 = vunpack.c.h.b16 %v1292
    %v1302 = vunpack.c.l.b16 %v1293
    %v1303 = vunpack.c.h.b16 %v1293
    %v1304 = vunpack.c.l.b16 %v1294
    %v1305 = vunpack.c.h.b16 %v1294
    %v1306 = vunpack.c.l.b16 %v1295
    %v1307 = vunpack.c.h.b16 %v1295
    %v1308 = vpack.c.b16 %v1300, %v1300
    %v1309 = vpack.c.b16 %v1301, %v1301
    %v1310 = vpack.c.b16 %v1302, %v1302
    %v1311 = vpack.c.b16 %v1303, %v1303
    %v1312 = vpack.c.b16 %v1304, %v1304
    %v1313 = vpack.c.b16 %v1305, %v1305
    %v1314 = vpack.c.b16 %v1306, %v1306
    %v1315 = vpack.c.b16 %v1307, %v1307
    %1324 = vst [vmem:[#allocation2 + $0xc] sm:$0xf] %v1308
    %1325 = vst [vmem:[#allocation2 + $0x1c] sm:$0xf] %v1309
    %1326 = vst [vmem:[#allocation2 + $0x2c] sm:$0xf] %v1310
    %1327 = vst [vmem:[#allocation2 + $0x3c] sm:$0xf] %v1311
    %1328 = vst [vmem:[#allocation2 + $0x4c] sm:$0xf] %v1312
    %1329 = vst [vmem:[#allocation2 + $0x5c] sm:$0xf] %v1313
    %1330 = vst [vmem:[#allocation2 + $0x6c] sm:$0xf] %v1314
    %1331 = vst [vmem:[#allocation2 + $0x7c] sm:$0xf] %v1315
    %v1332 = vld [vmem:[#allocation2] sm:$0xff]
    %v1333 = vld [vmem:[#allocation2 + $0x8] sm:$0xff]
    %v1334 = vld [vmem:[#allocation2 + $0x10] sm:$0xff]
    %v1335 = vld [vmem:[#allocation2 + $0x18] sm:$0xff]
    %v1336 = vld [vmem:[#allocation2 + $0x20] sm:$0xff]
    %v1337 = vld [vmem:[#allocation2 + $0x28] sm:$0xff]
    %v1338 = vld [vmem:[#allocation2 + $0x30] sm:$0xff]
    %v1339 = vld [vmem:[#allocation2 + $0x38] sm:$0xff]
    %v1340 = vld [vmem:[#allocation2 + $0x40] sm:$0xff]
    %v1341 = vld [vmem:[#allocation2 + $0x48] sm:$0xff]
    %v1342 = vld [vmem:[#allocation2 + $0x50] sm:$0xff]
    %v1343 = vld [vmem:[#allocation2 + $0x58] sm:$0xff]
    %v1344 = vld [vmem:[#allocation2 + $0x60] sm:$0xff]
    %v1345 = vld [vmem:[#allocation2 + $0x68] sm:$0xff]
    %v1346 = vld [vmem:[#allocation2 + $0x70] sm:$0xff]
    %v1347 = vld [vmem:[#allocation2 + $0x78] sm:$0xff]
    %v1348 = vmul.f32 %v1047, 0.6666667
    %v1349 = vmul.f32 %v1048, 0.6666667
    %v1350 = vmul.f32 %v1049, 0.6666667
    %v1351 = vmul.f32 %v1050, 0.6666667
    %v1352 = vmul.f32 %v1051, 0.6666667
    %v1353 = vmul.f32 %v1052, 0.6666667
    %v1354 = vmul.f32 %v1053, 0.6666667
    %v1355 = vmul.f32 %v1054, 0.6666667
    %v1372 = vunpack.c.l.b16 %v1332
    %v1373 = vunpack.c.h.b16 %v1332
    %v1374 = vunpack.c.l.b16 %v1333
    %v1375 = vunpack.c.h.b16 %v1333
    %v1376 = vunpack.c.l.b16 %v1334
    %v1377 = vunpack.c.h.b16 %v1334
    %v1378 = vunpack.c.l.b16 %v1335
    %v1379 = vunpack.c.h.b16 %v1335
    %v1380 = vunpack.c.l.b16 %v1336
    %v1381 = vunpack.c.h.b16 %v1336
    %v1382 = vunpack.c.l.b16 %v1337
    %v1383 = vunpack.c.h.b16 %v1337
    %v1384 = vunpack.c.l.b16 %v1338
    %v1385 = vunpack.c.h.b16 %v1338
    %v1386 = vunpack.c.l.b16 %v1339
    %v1387 = vunpack.c.h.b16 %v1339
    %v1388 = vunpack.c.l.b16 %v1340
    %v1389 = vunpack.c.h.b16 %v1340
    %v1390 = vunpack.c.l.b16 %v1341
    %v1391 = vunpack.c.h.b16 %v1341
    %v1392 = vunpack.c.l.b16 %v1342
    %v1393 = vunpack.c.h.b16 %v1342
    %v1394 = vunpack.c.l.b16 %v1343
    %v1395 = vunpack.c.h.b16 %v1343
    %v1396 = vunpack.c.l.b16 %v1344
    %v1397 = vunpack.c.h.b16 %v1344
    %v1398 = vunpack.c.l.b16 %v1345
    %v1399 = vunpack.c.h.b16 %v1345
    %v1400 = vunpack.c.l.b16 %v1346
    %v1401 = vunpack.c.h.b16 %v1346
    %v1402 = vunpack.c.l.b16 %v1347
    %v1403 = vunpack.c.h.b16 %v1347
    %v1404 = vpack.c.b16 %v1376, %v1372
    %v1405 = vpack.c.b16 %v1377, %v1373
    %v1406 = vpack.c.b16 %v1378, %v1374
    %v1407 = vpack.c.b16 %v1379, %v1375
    %v1408 = vpack.c.b16 %v1384, %v1380
    %v1409 = vpack.c.b16 %v1385, %v1381
    %v1410 = vpack.c.b16 %v1386, %v1382
    %v1411 = vpack.c.b16 %v1387, %v1383
    %v1412 = vpack.c.b16 %v1392, %v1388
    %v1413 = vpack.c.b16 %v1393, %v1389
    %v1414 = vpack.c.b16 %v1394, %v1390
    %v1415 = vpack.c.b16 %v1395, %v1391
    %v1416 = vpack.c.b16 %v1400, %v1396
    %v1417 = vpack.c.b16 %v1401, %v1397
    %v1418 = vpack.c.b16 %v1402, %v1398
    %v1419 = vpack.c.b16 %v1403, %v1399
    %1436 = vmatprep.subr.bf16.mxu0 0
    %1437 = vmatpush1.bf16.msra.mxu0 %v852
    %1438 = vmatprep.subr.bf16.mxu0 0
    %1439 = vmatpush1.bf16.msra.mxu0 %v851
    %1440 = vmatprep.subr.bf16.mxu0 0
    %1441 = vmatpush1.bf16.msra.mxu0 %v850
    %1442 = vmatprep.subr.bf16.mxu0 0
    %1443 = vmatpush1.bf16.msra.mxu0 %v849
    %1444 = vmatprep.subr.bf16.mxu0 0
    %1445 = vmatpush1.bf16.msra.mxu0 %v848
    %1446 = vmatprep.subr.bf16.mxu0 0
    %1447 = vmatpush1.bf16.msra.mxu0 %v847
    %1448 = vmatprep.subr.bf16.mxu0 0
    %1449 = vmatpush1.bf16.msra.mxu0 %v846
    %1450 = vmatprep.subr.bf16.mxu0 0
    %1451 = vmatpush1.bf16.msra.mxu0 %v845
    %1452 = vmatprep.subr.bf16.mxu0 0
    %1453 = vmatpush2.bf16.msra.mxu0 %v860
    %1454 = vmatprep.subr.bf16.mxu0 0
    %1455 = vmatpush2.bf16.msra.mxu0 %v859
    %1456 = vmatprep.subr.bf16.mxu0 0
    %1457 = vmatpush2.bf16.msra.mxu0 %v858
    %1458 = vmatprep.subr.bf16.mxu0 0
    %1459 = vmatpush2.bf16.msra.mxu0 %v857
    %1460 = vmatprep.subr.bf16.mxu0 0
    %1461 = vmatpush2.bf16.msra.mxu0 %v856
    %1462 = vmatprep.subr.bf16.mxu0 0
    %1463 = vmatpush2.bf16.msra.mxu0 %v855
    %1464 = vmatprep.subr.bf16.mxu0 0
    %1465 = vmatpush2.bf16.msra.mxu0 %v854
    %1466 = vmatprep.subr.bf16.mxu0 0
    %1467 = vmatpush2.bf16.msra.mxu0 %v853
    %1468 = vmatprep.mubr.bf16.mxu0 %v1405
    %1469 = vmatmul.mubr.bf16.gmra.mxu0 %v1404
    %v1470 = vpop.f32.mrf.mxu0
    %v1471 = vadd.f32 %v39, %v1470
    %v1472 = vpop.f32.mrf.mxu0
    %v1473 = vpop.f32.mrf.mxu0
    %v1474 = vadd.f32 %v40, %v1473
    %v1475 = vpop.f32.mrf.mxu0
    %1476 = vmatprep.mubr.bf16.mxu0 %v1409
    %1477 = vmatmul.mubr.bf16.gmra.mxu0 %v1408
    %v1478 = vpop.f32.mrf.mxu0
    %v1479 = vadd.f32 %v41, %v1478
    %v1480 = vpop.f32.mrf.mxu0
    %v1481 = vpop.f32.mrf.mxu0
    %v1482 = vadd.f32 %v42, %v1481
    %v1483 = vpop.f32.mrf.mxu0
    %1484 = vmatprep.mubr.bf16.mxu0 %v1413
    %1485 = vmatmul.mubr.bf16.gmra.mxu0 %v1412
    %v1486 = vpop.f32.mrf.mxu0
    %v1487 = vadd.f32 %v43, %v1486
    %v1488 = vpop.f32.mrf.mxu0
    %v1489 = vpop.f32.mrf.mxu0
    %v1490 = vadd.f32 %v44, %v1489
    %v1491 = vpop.f32.mrf.mxu0
    %1492 = vmatprep.mubr.bf16.mxu0 %v1417
    %1493 = vmatmul.mubr.bf16.gmra.mxu0 %v1416
    %v1494 = vpop.f32.mrf.mxu0
    %v1495 = vadd.f32 %v45, %v1494
    %v1496 = vpop.f32.mrf.mxu0
    %v1497 = vpop.f32.mrf.mxu0
    %v1498 = vadd.f32 %v46, %v1497
    %v1499 = vpop.f32.mrf.mxu0
    %1500 = vdwg.mxu0
    %1501 = vmatprep.subr.bf16.mxu0 0
    %1502 = vmatpush1.bf16.msra.mxu0 %v868
    %1503 = vmatprep.subr.bf16.mxu0 0
    %1504 = vmatpush1.bf16.msra.mxu0 %v867
    %1505 = vmatprep.subr.bf16.mxu0 0
    %1506 = vmatpush1.bf16.msra.mxu0 %v866
    %1507 = vmatprep.subr.bf16.mxu0 0
    %1508 = vmatpush1.bf16.msra.mxu0 %v865
    %1509 = vmatprep.subr.bf16.mxu0 0
    %1510 = vmatpush1.bf16.msra.mxu0 %v864
    %1511 = vmatprep.subr.bf16.mxu0 0
    %1512 = vmatpush1.bf16.msra.mxu0 %v863
    %1513 = vmatprep.subr.bf16.mxu0 0
    %1514 = vmatpush1.bf16.msra.mxu0 %v862
    %1515 = vmatprep.subr.bf16.mxu0 0
    %1516 = vmatpush1.bf16.msra.mxu0 %v861
    %1517 = vmatprep.subr.bf16.mxu0 0
    %1518 = vmatpush2.bf16.msra.mxu0 %v876
    %1519 = vmatprep.subr.bf16.mxu0 0
    %1520 = vmatpush2.bf16.msra.mxu0 %v875
    %1521 = vmatprep.subr.bf16.mxu0 0
    %1522 = vmatpush2.bf16.msra.mxu0 %v874
    %1523 = vmatprep.subr.bf16.mxu0 0
    %1524 = vmatpush2.bf16.msra.mxu0 %v873
    %1525 = vmatprep.subr.bf16.mxu0 0
    %1526 = vmatpush2.bf16.msra.mxu0 %v872
    %1527 = vmatprep.subr.bf16.mxu0 0
    %1528 = vmatpush2.bf16.msra.mxu0 %v871
    %1529 = vmatprep.subr.bf16.mxu0 0
    %1530 = vmatpush2.bf16.msra.mxu0 %v870
    %1531 = vmatprep.subr.bf16.mxu0 0
    %1532 = vmatpush2.bf16.msra.mxu0 %v869
    %1533 = vmatprep.mubr.bf16.mxu0 %v1407
    %1534 = vmatmul.mubr.bf16.gmra.mxu0 %v1406
    %v1535 = vpop.f32.mrf.mxu0
    %v1536 = vadd.f32 %v1471, %v1535
    %v1537 = vpop.f32.mrf.mxu0
    %v1538 = vpop.f32.mrf.mxu0
    %v1539 = vadd.f32 %v1474, %v1538
    %v1540 = vpop.f32.mrf.mxu0
    %1541 = vmatprep.mubr.bf16.mxu0 %v1411
    %1542 = vmatmul.mubr.bf16.gmra.mxu0 %v1410
    %v1543 = vpop.f32.mrf.mxu0
    %v1544 = vadd.f32 %v1479, %v1543
    %v1545 = vpop.f32.mrf.mxu0
    %v1546 = vpop.f32.mrf.mxu0
    %v1547 = vadd.f32 %v1482, %v1546
    %v1548 = vpop.f32.mrf.mxu0
    %1549 = vmatprep.mubr.bf16.mxu0 %v1415
    %1550 = vmatmul.mubr.bf16.gmra.mxu0 %v1414
    %v1551 = vpop.f32.mrf.mxu0
    %v1552 = vadd.f32 %v1487, %v1551
    %v1553 = vpop.f32.mrf.mxu0
    %v1554 = vpop.f32.mrf.mxu0
    %v1555 = vadd.f32 %v1490, %v1554
    %v1556 = vpop.f32.mrf.mxu0
    %1557 = vmatprep.mubr.bf16.mxu0 %v1419
    %1558 = vmatmul.mubr.bf16.gmra.mxu0 %v1418
    %v1559 = vpop.f32.mrf.mxu0
    %v1560 = vadd.f32 %v1495, %v1559
    %v1561 = vpop.f32.mrf.mxu0
    %v1562 = vpop.f32.mrf.mxu0
    %v1563 = vadd.f32 %v1498, %v1562
    %v1564 = vpop.f32.mrf.mxu0
    %1565 = vdwg.mxu0
    %v1566 = vmul.f32 %v234, %v1536
    %v1567 = vmul.f32 %v239, %v1539
    %v1568 = vmul.f32 %v244, %v1544
    %v1569 = vmul.f32 %v249, %v1547
    %v1570 = vmul.f32 %v254, %v1552
    %v1571 = vmul.f32 %v259, %v1555
    %v1572 = vmul.f32 %v264, %v1560
    %v1573 = vmul.f32 %v269, %v1563
    %v1574 = vadd.f32 %v1348, %v1566
    %v1575 = vadd.f32 %v1349, %v1567
    %v1576 = vadd.f32 %v1350, %v1568
    %v1577 = vadd.f32 %v1351, %v1569
    %v1578 = vadd.f32 %v1352, %v1570
    %v1579 = vadd.f32 %v1353, %v1571
    %v1580 = vadd.f32 %v1354, %v1572
    %v1581 = vadd.f32 %v1355, %v1573
    %v1582 = vpack.c.bf16 %v1575, %v1574
    %v1583 = vpack.c.bf16 %v1577, %v1576
    %v1584 = vpack.c.bf16 %v1579, %v1578
    %v1585 = vpack.c.bf16 %v1581, %v1580
    %1586 = vmatprep.subr.bf16.mxu0 0
    %1587 = vmatpush1.bf16.msra.mxu0 0
    %1588 = vmatprep.subr.bf16.mxu0 0
    %1589 = vmatpush1.bf16.msra.mxu0 0
    %1590 = vmatprep.subr.bf16.mxu0 0
    %1591 = vmatpush1.bf16.msra.mxu0 0
    %1592 = vmatprep.subr.bf16.mxu0 0
    %1593 = vmatpush1.bf16.msra.mxu0 0
    %1594 = vmatprep.subr.bf16.mxu0 0
    %1595 = vmatpush1.bf16.msra.mxu0 %v1585
    %1596 = vmatprep.subr.bf16.mxu0 0
    %1597 = vmatpush1.bf16.msra.mxu0 %v1584
    %1598 = vmatprep.subr.bf16.mxu0 0
    %1599 = vmatpush1.bf16.msra.mxu0 %v1583
    %1600 = vmatprep.subr.bf16.mxu0 0
    %1601 = vmatpush1.bf16.msra.mxu0 %v1582
    %1602 = vmatprep.subr.bf16.mxu0 0
    %1603 = vmatpush2.bf16.msra.mxu0 0
    %1604 = vmatprep.subr.bf16.mxu0 0
    %1605 = vmatpush2.bf16.msra.mxu0 0
    %1606 = vmatprep.subr.bf16.mxu0 0
    %1607 = vmatpush2.bf16.msra.mxu0 0
    %1608 = vmatprep.subr.bf16.mxu0 0
    %1609 = vmatpush2.bf16.msra.mxu0 0
    %1610 = vmatprep.subr.bf16.mxu0 0
    %1611 = vmatpush2.bf16.msra.mxu0 0
    %1612 = vmatprep.subr.bf16.mxu0 0
    %1613 = vmatpush2.bf16.msra.mxu0 0
    %1614 = vmatprep.subr.bf16.mxu0 0
    %1615 = vmatpush2.bf16.msra.mxu0 0
    %1616 = vmatprep.subr.bf16.mxu0 0
    %1617 = vmatpush2.bf16.msra.mxu0 0
    %1618 = vmatprep.mubr.bf16.mxu0 0
    %1619 = vmatmul.mubr.bf16.gmra.mxu0 %v317
    %v1620 = vpop.f32.mrf.mxu0
    %v1621 = vadd.f32 0.0, %v1620
    %v1622 = vpop.f32.mrf.mxu0
    %v1623 = vpop.f32.mrf.mxu0
    %v1624 = vadd.f32 0.0, %v1623
    %v1625 = vpop.f32.mrf.mxu0
    %1626 = vmatprep.mubr.bf16.mxu0 0
    %1627 = vmatmul.mubr.bf16.gmra.mxu0 %v320
    %v1628 = vpop.f32.mrf.mxu0
    %v1629 = vadd.f32 0.0, %v1628
    %v1630 = vpop.f32.mrf.mxu0
    %v1631 = vpop.f32.mrf.mxu0
    %v1632 = vadd.f32 0.0, %v1631
    %v1633 = vpop.f32.mrf.mxu0
    %1634 = vmatprep.mubr.bf16.mxu0 0
    %1635 = vmatmul.mubr.bf16.gmra.mxu0 %v323
    %v1636 = vpop.f32.mrf.mxu0
    %v1637 = vadd.f32 0.0, %v1636
    %v1638 = vpop.f32.mrf.mxu0
    %v1639 = vpop.f32.mrf.mxu0
    %v1640 = vadd.f32 0.0, %v1639
    %v1641 = vpop.f32.mrf.mxu0
    %1642 = vmatprep.mubr.bf16.mxu0 0
    %1643 = vmatmul.mubr.bf16.gmra.mxu0 %v326
    %v1644 = vpop.f32.mrf.mxu0
    %v1645 = vadd.f32 0.0, %v1644
    %v1646 = vpop.f32.mrf.mxu0
    %v1647 = vpop.f32.mrf.mxu0
    %v1648 = vadd.f32 0.0, %v1647
    %v1649 = vpop.f32.mrf.mxu0
    %1650 = vmatprep.mubr.bf16.mxu0 0
    %1651 = vmatmul.mubr.bf16.gmra.mxu0 %v329
    %v1652 = vpop.f32.mrf.mxu0
    %v1653 = vadd.f32 0.0, %v1652
    %v1654 = vpop.f32.mrf.mxu0
    %v1655 = vpop.f32.mrf.mxu0
    %v1656 = vadd.f32 0.0, %v1655
    %v1657 = vpop.f32.mrf.mxu0
    %1658 = vmatprep.mubr.bf16.mxu0 0
    %1659 = vmatmul.mubr.bf16.gmra.mxu0 %v332
    %v1660 = vpop.f32.mrf.mxu0
    %v1661 = vadd.f32 0.0, %v1660
    %v1662 = vpop.f32.mrf.mxu0
    %v1663 = vpop.f32.mrf.mxu0
    %v1664 = vadd.f32 0.0, %v1663
    %v1665 = vpop.f32.mrf.mxu0
    %1666 = vmatprep.mubr.bf16.mxu0 0
    %1667 = vmatmul.mubr.bf16.gmra.mxu0 %v335
    %v1668 = vpop.f32.mrf.mxu0
    %v1669 = vadd.f32 0.0, %v1668
    %v1670 = vpop.f32.mrf.mxu0
    %v1671 = vpop.f32.mrf.mxu0
    %v1672 = vadd.f32 0.0, %v1671
    %v1673 = vpop.f32.mrf.mxu0
    %1674 = vmatprep.mubr.bf16.mxu0 0
    %1675 = vmatmul.mubr.bf16.gmra.mxu0 %v338
    %v1676 = vpop.f32.mrf.mxu0
    %v1677 = vadd.f32 0.0, %v1676
    %v1678 = vpop.f32.mrf.mxu0
    %v1679 = vpop.f32.mrf.mxu0
    %v1680 = vadd.f32 0.0, %v1679
    %v1681 = vpop.f32.mrf.mxu0
    %1682 = vdwg.mxu0
    %v1683 = vmul.f32 %v138, %v1574
    %v1684 = vmul.f32 %v143, %v1575
    %v1685 = vmul.f32 %v148, %v1576
    %v1686 = vmul.f32 %v153, %v1577
    %v1687 = vmul.f32 %v158, %v1578
    %v1688 = vmul.f32 %v163, %v1579
    %v1689 = vmul.f32 %v168, %v1580
    %v1690 = vmul.f32 %v173, %v1581
    %v1691 = vmul.f32 %v186, %v1574
    %v1692 = vmul.f32 %v191, %v1575
    %v1693 = vmul.f32 %v196, %v1576
    %v1694 = vmul.f32 %v201, %v1577
    %v1695 = vmul.f32 %v206, %v1578
    %v1696 = vmul.f32 %v211, %v1579
    %v1697 = vmul.f32 %v216, %v1580
    %v1698 = vmul.f32 %v221, %v1581
    %v1699 = vpack.c.bf16 %v1624, %v1621
    %v1700 = vpack.c.bf16 %v1632, %v1629
    %v1701 = vpack.c.bf16 %v1640, %v1637
    %v1702 = vpack.c.bf16 %v1648, %v1645
    %v1707 = vunpack.c.l.b16 %v1699
    %v1708 = vunpack.c.h.b16 %v1699
    %v1709 = vunpack.c.l.b16 %v1700
    %v1710 = vunpack.c.h.b16 %v1700
    %v1711 = vunpack.c.l.b16 %v1701
    %v1712 = vunpack.c.h.b16 %v1701
    %v1713 = vunpack.c.l.b16 %v1702
    %v1714 = vunpack.c.h.b16 %v1702
    %v1715 = vpack.c.b16 %v1707, %v1707
    %v1716 = vpack.c.b16 %v1708, %v1708
    %v1717 = vpack.c.b16 %v1709, %v1709
    %v1718 = vpack.c.b16 %v1710, %v1710
    %v1719 = vpack.c.b16 %v1711, %v1711
    %v1720 = vpack.c.b16 %v1712, %v1712
    %v1721 = vpack.c.b16 %v1713, %v1713
    %v1722 = vpack.c.b16 %v1714, %v1714
    %1731 = vst [vmem:[#allocation2] sm:$0xf] %v1715
    %1732 = vst [vmem:[#allocation2 + $0x10] sm:$0xf] %v1716
    %1733 = vst [vmem:[#allocation2 + $0x20] sm:$0xf] %v1717
    %1734 = vst [vmem:[#allocation2 + $0x30] sm:$0xf] %v1718
    %1735 = vst [vmem:[#allocation2 + $0x40] sm:$0xf] %v1719
    %1736 = vst [vmem:[#allocation2 + $0x50] sm:$0xf] %v1720
    %1737 = vst [vmem:[#allocation2 + $0x60] sm:$0xf] %v1721
    %1738 = vst [vmem:[#allocation2 + $0x70] sm:$0xf] %v1722
    %v1739 = vpack.c.bf16 %v1684, %v1683
    %v1740 = vpack.c.bf16 %v1686, %v1685
    %v1741 = vpack.c.bf16 %v1688, %v1687
    %v1742 = vpack.c.bf16 %v1690, %v1689
    %v1747 = vunpack.c.l.b16 %v1739
    %v1748 = vunpack.c.h.b16 %v1739
    %v1749 = vunpack.c.l.b16 %v1740
    %v1750 = vunpack.c.h.b16 %v1740
    %v1751 = vunpack.c.l.b16 %v1741
    %v1752 = vunpack.c.h.b16 %v1741
    %v1753 = vunpack.c.l.b16 %v1742
    %v1754 = vunpack.c.h.b16 %v1742
    %v1755 = vpack.c.b16 %v1747, %v1747
    %v1756 = vpack.c.b16 %v1748, %v1748
    %v1757 = vpack.c.b16 %v1749, %v1749
    %v1758 = vpack.c.b16 %v1750, %v1750
    %v1759 = vpack.c.b16 %v1751, %v1751
    %v1760 = vpack.c.b16 %v1752, %v1752
    %v1761 = vpack.c.b16 %v1753, %v1753
    %v1762 = vpack.c.b16 %v1754, %v1754
    %1771 = vst [vmem:[#allocation2 + $0x4] sm:$0xf] %v1755
    %1772 = vst [vmem:[#allocation2 + $0x14] sm:$0xf] %v1756
    %1773 = vst [vmem:[#allocation2 + $0x24] sm:$0xf] %v1757
    %1774 = vst [vmem:[#allocation2 + $0x34] sm:$0xf] %v1758
    %1775 = vst [vmem:[#allocation2 + $0x44] sm:$0xf] %v1759
    %1776 = vst [vmem:[#allocation2 + $0x54] sm:$0xf] %v1760
    %1777 = vst [vmem:[#allocation2 + $0x64] sm:$0xf] %v1761
    %1778 = vst [vmem:[#allocation2 + $0x74] sm:$0xf] %v1762
    %v1779 = vpack.c.bf16 %v1656, %v1653
    %v1780 = vpack.c.bf16 %v1664, %v1661
    %v1781 = vpack.c.bf16 %v1672, %v1669
    %v1782 = vpack.c.bf16 %v1680, %v1677
    %v1787 = vunpack.c.l.b16 %v1779
    %v1788 = vunpack.c.h.b16 %v1779
    %v1789 = vunpack.c.l.b16 %v1780
    %v1790 = vunpack.c.h.b16 %v1780
    %v1791 = vunpack.c.l.b16 %v1781
    %v1792 = vunpack.c.h.b16 %v1781
    %v1793 = vunpack.c.l.b16 %v1782
    %v1794 = vunpack.c.h.b16 %v1782
    %v1795 = vpack.c.b16 %v1787, %v1787
    %v1796 = vpack.c.b16 %v1788, %v1788
    %v1797 = vpack.c.b16 %v1789, %v1789
    %v1798 = vpack.c.b16 %v1790, %v1790
    %v1799 = vpack.c.b16 %v1791, %v1791
    %v1800 = vpack.c.b16 %v1792, %v1792
    %v1801 = vpack.c.b16 %v1793, %v1793
    %v1802 = vpack.c.b16 %v1794, %v1794
    %1811 = vst [vmem:[#allocation2 + $0x8] sm:$0xf] %v1795
    %1812 = vst [vmem:[#allocation2 + $0x18] sm:$0xf] %v1796
    %1813 = vst [vmem:[#allocation2 + $0x28] sm:$0xf] %v1797
    %1814 = vst [vmem:[#allocation2 + $0x38] sm:$0xf] %v1798
    %1815 = vst [vmem:[#allocation2 + $0x48] sm:$0xf] %v1799
    %1816 = vst [vmem:[#allocation2 + $0x58] sm:$0xf] %v1800
    %1817 = vst [vmem:[#allocation2 + $0x68] sm:$0xf] %v1801
    %1818 = vst [vmem:[#allocation2 + $0x78] sm:$0xf] %v1802
    %v1819 = vpack.c.bf16 %v1692, %v1691
    %v1820 = vpack.c.bf16 %v1694, %v1693
    %v1821 = vpack.c.bf16 %v1696, %v1695
    %v1822 = vpack.c.bf16 %v1698, %v1697
    %v1827 = vunpack.c.l.b16 %v1819
    %v1828 = vunpack.c.h.b16 %v1819
    %v1829 = vunpack.c.l.b16 %v1820
    %v1830 = vunpack.c.h.b16 %v1820
    %v1831 = vunpack.c.l.b16 %v1821
    %v1832 = vunpack.c.h.b16 %v1821
    %v1833 = vunpack.c.l.b16 %v1822
    %v1834 = vunpack.c.h.b16 %v1822
    %v1835 = vpack.c.b16 %v1827, %v1827
    %v1836 = vpack.c.b16 %v1828, %v1828
    %v1837 = vpack.c.b16 %v1829, %v1829
    %v1838 = vpack.c.b16 %v1830, %v1830
    %v1839 = vpack.c.b16 %v1831, %v1831
    %v1840 = vpack.c.b16 %v1832, %v1832
    %v1841 = vpack.c.b16 %v1833, %v1833
    %v1842 = vpack.c.b16 %v1834, %v1834
    %1851 = vst [vmem:[#allocation2 + $0xc] sm:$0xf] %v1835
    %1852 = vst [vmem:[#allocation2 + $0x1c] sm:$0xf] %v1836
    %1853 = vst [vmem:[#allocation2 + $0x2c] sm:$0xf] %v1837
    %1854 = vst [vmem:[#allocation2 + $0x3c] sm:$0xf] %v1838
    %1855 = vst [vmem:[#allocation2 + $0x4c] sm:$0xf] %v1839
    %1856 = vst [vmem:[#allocation2 + $0x5c] sm:$0xf] %v1840
    %1857 = vst [vmem:[#allocation2 + $0x6c] sm:$0xf] %v1841
    %1858 = vst [vmem:[#allocation2 + $0x7c] sm:$0xf] %v1842
    %v1859 = vld [vmem:[#allocation2] sm:$0xff]
    %v1860 = vld [vmem:[#allocation2 + $0x8] sm:$0xff]
    %v1861 = vld [vmem:[#allocation2 + $0x10] sm:$0xff]
    %v1862 = vld [vmem:[#allocation2 + $0x18] sm:$0xff]
    %v1863 = vld [vmem:[#allocation2 + $0x20] sm:$0xff]
    %v1864 = vld [vmem:[#allocation2 + $0x28] sm:$0xff]
    %v1865 = vld [vmem:[#allocation2 + $0x30] sm:$0xff]
    %v1866 = vld [vmem:[#allocation2 + $0x38] sm:$0xff]
    %v1867 = vld [vmem:[#allocation2 + $0x40] sm:$0xff]
    %v1868 = vld [vmem:[#allocation2 + $0x48] sm:$0xff]
    %v1869 = vld [vmem:[#allocation2 + $0x50] sm:$0xff]
    %v1870 = vld [vmem:[#allocation2 + $0x58] sm:$0xff]
    %v1871 = vld [vmem:[#allocation2 + $0x60] sm:$0xff]
    %v1872 = vld [vmem:[#allocation2 + $0x68] sm:$0xff]
    %v1873 = vld [vmem:[#allocation2 + $0x70] sm:$0xff]
    %v1874 = vld [vmem:[#allocation2 + $0x78] sm:$0xff]
    %v1875 = vmul.f32 %v1574, 0.6666667
    %v1876 = vmul.f32 %v1575, 0.6666667
    %v1877 = vmul.f32 %v1576, 0.6666667
    %v1878 = vmul.f32 %v1577, 0.6666667
    %v1879 = vmul.f32 %v1578, 0.6666667
    %v1880 = vmul.f32 %v1579, 0.6666667
    %v1881 = vmul.f32 %v1580, 0.6666667
    %v1882 = vmul.f32 %v1581, 0.6666667
    %v1899 = vunpack.c.l.b16 %v1859
    %v1900 = vunpack.c.h.b16 %v1859
    %v1901 = vunpack.c.l.b16 %v1860
    %v1902 = vunpack.c.h.b16 %v1860
    %v1903 = vunpack.c.l.b16 %v1861
    %v1904 = vunpack.c.h.b16 %v1861
    %v1905 = vunpack.c.l.b16 %v1862
    %v1906 = vunpack.c.h.b16 %v1862
    %v1907 = vunpack.c.l.b16 %v1863
    %v1908 = vunpack.c.h.b16 %v1863
    %v1909 = vunpack.c.l.b16 %v1864
    %v1910 = vunpack.c.h.b16 %v1864
    %v1911 = vunpack.c.l.b16 %v1865
    %v1912 = vunpack.c.h.b16 %v1865
    %v1913 = vunpack.c.l.b16 %v1866
    %v1914 = vunpack.c.h.b16 %v1866
    %v1915 = vunpack.c.l.b16 %v1867
    %v1916 = vunpack.c.h.b16 %v1867
    %v1917 = vunpack.c.l.b16 %v1868
    %v1918 = vunpack.c.h.b16 %v1868
    %v1919 = vunpack.c.l.b16 %v1869
    %v1920 = vunpack.c.h.b16 %v1869
    %v1921 = vunpack.c.l.b16 %v1870
    %v1922 = vunpack.c.h.b16 %v1870
    %v1923 = vunpack.c.l.b16 %v1871
    %v1924 = vunpack.c.h.b16 %v1871
    %v1925 = vunpack.c.l.b16 %v1872
    %v1926 = vunpack.c.h.b16 %v1872
    %v1927 = vunpack.c.l.b16 %v1873
    %v1928 = vunpack.c.h.b16 %v1873
    %v1929 = vunpack.c.l.b16 %v1874
    %v1930 = vunpack.c.h.b16 %v1874
    %v1931 = vpack.c.b16 %v1903, %v1899
    %v1932 = vpack.c.b16 %v1904, %v1900
    %v1933 = vpack.c.b16 %v1905, %v1901
    %v1934 = vpack.c.b16 %v1906, %v1902
    %v1935 = vpack.c.b16 %v1911, %v1907
    %v1936 = vpack.c.b16 %v1912, %v1908
    %v1937 = vpack.c.b16 %v1913, %v1909
    %v1938 = vpack.c.b16 %v1914, %v1910
    %v1939 = vpack.c.b16 %v1919, %v1915
    %v1940 = vpack.c.b16 %v1920, %v1916
    %v1941 = vpack.c.b16 %v1921, %v1917
    %v1942 = vpack.c.b16 %v1922, %v1918
    %v1943 = vpack.c.b16 %v1927, %v1923
    %v1944 = vpack.c.b16 %v1928, %v1924
    %v1945 = vpack.c.b16 %v1929, %v1925
    %v1946 = vpack.c.b16 %v1930, %v1926
    %1963 = vmatprep.subr.bf16.mxu0 0
    %1964 = vmatpush1.bf16.msra.mxu0 %v852
    %1965 = vmatprep.subr.bf16.mxu0 0
    %1966 = vmatpush1.bf16.msra.mxu0 %v851
    %1967 = vmatprep.subr.bf16.mxu0 0
    %1968 = vmatpush1.bf16.msra.mxu0 %v850
    %1969 = vmatprep.subr.bf16.mxu0 0
    %1970 = vmatpush1.bf16.msra.mxu0 %v849
    %1971 = vmatprep.subr.bf16.mxu0 0
    %1972 = vmatpush1.bf16.msra.mxu0 %v848
    %1973 = vmatprep.subr.bf16.mxu0 0
    %1974 = vmatpush1.bf16.msra.mxu0 %v847
    %1975 = vmatprep.subr.bf16.mxu0 0
    %1976 = vmatpush1.bf16.msra.mxu0 %v846
    %1977 = vmatprep.subr.bf16.mxu0 0
    %1978 = vmatpush1.bf16.msra.mxu0 %v845
    %1979 = vmatprep.subr.bf16.mxu0 0
    %1980 = vmatpush2.bf16.msra.mxu0 %v860
    %1981 = vmatprep.subr.bf16.mxu0 0
    %1982 = vmatpush2.bf16.msra.mxu0 %v859
    %1983 = vmatprep.subr.bf16.mxu0 0
    %1984 = vmatpush2.bf16.msra.mxu0 %v858
    %1985 = vmatprep.subr.bf16.mxu0 0
    %1986 = vmatpush2.bf16.msra.mxu0 %v857
    %1987 = vmatprep.subr.bf16.mxu0 0
    %1988 = vmatpush2.bf16.msra.mxu0 %v856
    %1989 = vmatprep.subr.bf16.mxu0 0
    %1990 = vmatpush2.bf16.msra.mxu0 %v855
    %1991 = vmatprep.subr.bf16.mxu0 0
    %1992 = vmatpush2.bf16.msra.mxu0 %v854
    %1993 = vmatprep.subr.bf16.mxu0 0
    %1994 = vmatpush2.bf16.msra.mxu0 %v853
    %1995 = vmatprep.mubr.bf16.mxu0 %v1932
    %1996 = vmatmul.mubr.bf16.gmra.mxu0 %v1931
    %v1997 = vpop.f32.mrf.mxu0
    %v1998 = vadd.f32 %v39, %v1997
    %v1999 = vpop.f32.mrf.mxu0
    %v2000 = vpop.f32.mrf.mxu0
    %v2001 = vadd.f32 %v40, %v2000
    %v2002 = vpop.f32.mrf.mxu0
    %2003 = vmatprep.mubr.bf16.mxu0 %v1936
    %2004 = vmatmul.mubr.bf16.gmra.mxu0 %v1935
    %v2005 = vpop.f32.mrf.mxu0
    %v2006 = vadd.f32 %v41, %v2005
    %v2007 = vpop.f32.mrf.mxu0
    %v2008 = vpop.f32.mrf.mxu0
    %v2009 = vadd.f32 %v42, %v2008
    %v2010 = vpop.f32.mrf.mxu0
    %2011 = vmatprep.mubr.bf16.mxu0 %v1940
    %2012 = vmatmul.mubr.bf16.gmra.mxu0 %v1939
    %v2013 = vpop.f32.mrf.mxu0
    %v2014 = vadd.f32 %v43, %v2013
    %v2015 = vpop.f32.mrf.mxu0
    %v2016 = vpop.f32.mrf.mxu0
    %v2017 = vadd.f32 %v44, %v2016
    %v2018 = vpop.f32.mrf.mxu0
    %2019 = vmatprep.mubr.bf16.mxu0 %v1944
    %2020 = vmatmul.mubr.bf16.gmra.mxu0 %v1943
    %v2021 = vpop.f32.mrf.mxu0
    %v2022 = vadd.f32 %v45, %v2021
    %v2023 = vpop.f32.mrf.mxu0
    %v2024 = vpop.f32.mrf.mxu0
    %v2025 = vadd.f32 %v46, %v2024
    %v2026 = vpop.f32.mrf.mxu0
    %2027 = vdwg.mxu0
    %2028 = vmatprep.subr.bf16.mxu0 0
    %2029 = vmatpush1.bf16.msra.mxu0 %v868
    %2030 = vmatprep.subr.bf16.mxu0 0
    %2031 = vmatpush1.bf16.msra.mxu0 %v867
    %2032 = vmatprep.subr.bf16.mxu0 0
    %2033 = vmatpush1.bf16.msra.mxu0 %v866
    %2034 = vmatprep.subr.bf16.mxu0 0
    %2035 = vmatpush1.bf16.msra.mxu0 %v865
    %2036 = vmatprep.subr.bf16.mxu0 0
    %2037 = vmatpush1.bf16.msra.mxu0 %v864
    %2038 = vmatprep.subr.bf16.mxu0 0
    %2039 = vmatpush1.bf16.msra.mxu0 %v863
    %2040 = vmatprep.subr.bf16.mxu0 0
    %2041 = vmatpush1.bf16.msra.mxu0 %v862
    %2042 = vmatprep.subr.bf16.mxu0 0
    %2043 = vmatpush1.bf16.msra.mxu0 %v861
    %2044 = vmatprep.subr.bf16.mxu0 0
    %2045 = vmatpush2.bf16.msra.mxu0 %v876
    %2046 = vmatprep.subr.bf16.mxu0 0
    %2047 = vmatpush2.bf16.msra.mxu0 %v875
    %2048 = vmatprep.subr.bf16.mxu0 0
    %2049 = vmatpush2.bf16.msra.mxu0 %v874
    %2050 = vmatprep.subr.bf16.mxu0 0
    %2051 = vmatpush2.bf16.msra.mxu0 %v873
    %2052 = vmatprep.subr.bf16.mxu0 0
    %2053 = vmatpush2.bf16.msra.mxu0 %v872
    %2054 = vmatprep.subr.bf16.mxu0 0
    %2055 = vmatpush2.bf16.msra.mxu0 %v871
    %2056 = vmatprep.subr.bf16.mxu0 0
    %2057 = vmatpush2.bf16.msra.mxu0 %v870
    %2058 = vmatprep.subr.bf16.mxu0 0
    %2059 = vmatpush2.bf16.msra.mxu0 %v869
    %2060 = vmatprep.mubr.bf16.mxu0 %v1934
    %2061 = vmatmul.mubr.bf16.gmra.mxu0 %v1933
    %v2062 = vpop.f32.mrf.mxu0
    %v2063 = vadd.f32 %v1998, %v2062
    %v2064 = vpop.f32.mrf.mxu0
    %v2065 = vpop.f32.mrf.mxu0
    %v2066 = vadd.f32 %v2001, %v2065
    %v2067 = vpop.f32.mrf.mxu0
    %2068 = vmatprep.mubr.bf16.mxu0 %v1938
    %2069 = vmatmul.mubr.bf16.gmra.mxu0 %v1937
    %v2070 = vpop.f32.mrf.mxu0
    %v2071 = vadd.f32 %v2006, %v2070
    %v2072 = vpop.f32.mrf.mxu0
    %v2073 = vpop.f32.mrf.mxu0
    %v2074 = vadd.f32 %v2009, %v2073
    %v2075 = vpop.f32.mrf.mxu0
    %2076 = vmatprep.mubr.bf16.mxu0 %v1942
    %2077 = vmatmul.mubr.bf16.gmra.mxu0 %v1941
    %v2078 = vpop.f32.mrf.mxu0
    %v2079 = vadd.f32 %v2014, %v2078
    %v2080 = vpop.f32.mrf.mxu0
    %v2081 = vpop.f32.mrf.mxu0
    %v2082 = vadd.f32 %v2017, %v2081
    %v2083 = vpop.f32.mrf.mxu0
    %2084 = vmatprep.mubr.bf16.mxu0 %v1946
    %2085 = vmatmul.mubr.bf16.gmra.mxu0 %v1945
    %v2086 = vpop.f32.mrf.mxu0
    %v2087 = vadd.f32 %v2022, %v2086
    %v2088 = vpop.f32.mrf.mxu0
    %v2089 = vpop.f32.mrf.mxu0
    %v2090 = vadd.f32 %v2025, %v2089
    %v2091 = vpop.f32.mrf.mxu0
    %2092 = vdwg.mxu0
    %v2093 = vmul.f32 %v234, %v2063
    %v2094 = vmul.f32 %v239, %v2066
    %v2095 = vmul.f32 %v244, %v2071
    %v2096 = vmul.f32 %v249, %v2074
    %v2097 = vmul.f32 %v254, %v2079
    %v2098 = vmul.f32 %v259, %v2082
    %v2099 = vmul.f32 %v264, %v2087
    %v2100 = vmul.f32 %v269, %v2090
    %v2101 = vadd.f32 %v1875, %v2093
    %v2102 = vadd.f32 %v1876, %v2094
    %v2103 = vadd.f32 %v1877, %v2095
    %v2104 = vadd.f32 %v1878, %v2096
    %v2105 = vadd.f32 %v1879, %v2097
    %v2106 = vadd.f32 %v1880, %v2098
    %v2107 = vadd.f32 %v1881, %v2099
    %v2108 = vadd.f32 %v1882, %v2100
    %2109 = vst [vmem:[#allocation6] sm:$0xff] %v2101
    %2110 = vst [vmem:[#allocation6 + $0x8] sm:$0xff] %v2102
    %2111 = vst [vmem:[#allocation6 + $0x10] sm:$0xff] %v2103
    %2112 = vst [vmem:[#allocation6 + $0x18] sm:$0xff] %v2104
    %2113 = vst [vmem:[#allocation6 + $0x20] sm:$0xff] %v2105
    %2114 = vst [vmem:[#allocation6 + $0x28] sm:$0xff] %v2106
    %2115 = vst [vmem:[#allocation6 + $0x30] sm:$0xff] %v2107
    %2116 = vst [vmem:[#allocation6 + $0x38] sm:$0xff] %v2108
    // Predicated region
    $region30: #{tpu_custom_call.1} parent=1 // pred_check
      _
    $region31: #{tpu_custom_call.1} parent=1 // pred_check_branch
      %2118 = sbr.rel (0) target = $region33
    $region32: #{tpu_custom_call.1} parent=1 // pred_region
      %s2120 = ssub.s32 1024, 1024
      %2121 = vsyncadd [#allocation5], %s2120
      %s2122 = sshll.u32 [#allocation6], 4
      %s2123 = int_to_ptr.vmem [resolvable:$true] %s2122
      %2128 = dma.vmem_to_hbm [thread:$0]  %s2123, 1024, %s6, [#allocation5], 128, 128, 8
    $region33: #{tpu_custom_call.1} parent=1 // pred_fallthru
      _
    // Predicated region
    $region34: #{tpu_custom_call.1} parent=1 // pred_check
      _
    $region35: #{tpu_custom_call.1} parent=1 // pred_check_branch
      %2130 = sbr.rel (0) target = $region37
    $region36: #{tpu_custom_call.1} parent=1 // pred_region
      %2131 = dma.done [#allocation5], 1024
    $region37: #{tpu_custom_call.1} parent=1 // pred_fallthru
      _
    %2132 = vsyncpa [#allocation4], 1
    %2133 = vsyncpa [#allocation5], 1

</llo_original>
